<compile_context>
chip_gen: v7x
topology: tpu7x:2x2x1
jax: 0.10.0
libtpu: 0.0.40
codegen_flags: <defaults>
</compile_context>

<pallas_src>
import numpy as np
import jax
import jax.numpy as jnp
from jax import lax
from jax.experimental import pallas as pl
from jax.experimental.pallas import tpu as pltpu

_SUBLANE = 8
_LANE = 128
_VMEM_SPEC = pl.BlockSpec(memory_space=pltpu.MemorySpace.VMEM)


# ----------------------------------------------------------------------------
# small helpers (in-kernel math uses Python-float constants only)
# ----------------------------------------------------------------------------
def _round_up(n, m):
    return ((n + m - 1) // m) * m


def _pad2d(x, rows, cols):
    r, c = x.shape
    if r == rows and c == cols:
        return x
    return jnp.pad(x, ((0, rows - r), (0, cols - c)))


def _gelu_tanh(x):
    # tanh approximation of GELU (EUP-friendly).
    # TODO(synk): PyTorch's default GELU is the exact erf form; the tanh form
    # deviates by <~1e-3 absolute.
    c = 0.7978845608028654  # sqrt(2/pi)
    return 0.5 * x * (1.0 + jnp.tanh(c * (x + 0.044715 * x * x * x)))


def _explin(raw):
    # 'explin' logstd normalisation: std = exp(raw) if raw<=0 else raw+1.
    return jnp.where(raw > 0.0, raw + 1.0, jnp.exp(raw))


def _bounded(raw, lo, hi):
    # 'bounded' logstd normalisation: std = lo + (hi-lo)*sigmoid(raw).
    # approx reciprocal -> EUP slot, hidden under the MXU matmuls.
    sig = pl.reciprocal(1.0 + jnp.exp(-raw), approx=True)
    return lo + (hi - lo) * sig


# ----------------------------------------------------------------------------
# FFNet parameters (pre-padded once; distribution head pre-split into mu/raw)
# ----------------------------------------------------------------------------
class FFNetParams:
    """Stack of FFBlocks (GELU -> Linear), like the PyTorch FFNet.

    Weights are padded to lane-dense (128,128)/(1,128) tiles at construction.
    The final block is split into a mu head and a raw-logstd head so that the
    fused LadderVAE kernel never slices dist[:, z:] at a non-128 boundary.
    """

    def __init__(self, key, in_dim, out_dim, hidden_ff_out_dims=None,
                 skip_connection=False):
        assert not skip_connection, "TODO(synk): FFNet skip_connection"
        assert out_dim % 2 == 0, "distribution head dimension must be even"
        assert in_dim <= _LANE and out_dim <= _LANE, \
            "TODO(synk): dims > 128 need a tiled (grid) matmul path"
        self.in_dim = in_dim
        self.out_dim = out_dim
        self.z_dim = out_dim // 2
        dims = list(hidden_ff_out_dims or []) + [out_dim]
        self.raw_blocks = []   # unpadded (w, b), kept for the pure-JAX reference
        self.hidden = []       # padded hidden blocks [(w(128,128), b(1,128)), ...]
        last = in_dim
        for idx, d in enumerate(dims):
            key, wk, bk = jax.random.split(key, 3)
            limit = 1.0 / float(np.sqrt(last))
            # stored as (in, out) so the kernel does x @ W directly
            w = jax.random.uniform(wk, (last, d), jnp.float32, -limit, limit)
            b = jax.random.uniform(bk, (d,), jnp.float32, -limit, limit)
            self.raw_blocks.append((w, b))
            if idx < len(dims) - 1:
                assert d <= _LANE
                self.hidden.append((_pad2d(w, _LANE, _LANE),
                                    _pad2d(b.reshape(1, -1), 1, _LANE)))
            else:
                z = self.z_dim
                self.head = (_pad2d(w[:, :z], _LANE, _LANE),
                             _pad2d(b[:z].reshape(1, -1), 1, _LANE),
                             _pad2d(w[:, z:], _LANE, _LANE),
                             _pad2d(b[z:].reshape(1, -1), 1, _LANE))
            last = d

    @property
    def n_hidden(self):
        return len(self.hidden)

    def flat_params(self):
        flat = []
        for w, b in self.hidden:
            flat += [w, b]
        flat += list(self.head)
        return flat


# ----------------------------------------------------------------------------
# LadderVAE — whole forward pass as a single fused Pallas kernel
# ----------------------------------------------------------------------------
class LadderVAE:
    def __init__(self, key, in_dim, ladder_dims, z_dims,
                 inference_hidden_dims=None, generative_hidden_dims=None,
                 gen_skip_connection=False):
        n = len(ladder_dims)
        assert n == len(z_dims)
        if inference_hidden_dims is not None:
            assert n == len(inference_hidden_dims)
        if generative_hidden_dims is not None:
            assert n == len(generative_hidden_dims)
        self.n_vae_layers = n
        self.in_dim = in_dim
        self.ladder_dims = list(ladder_dims)
        self.z_dims = list(z_dims)
        self.gen_std_bound_min = 0.001
        self.gen_std_bound_max = 1.0
        self.do_gen_skip_connection = gen_skip_connection

        self.inference_layers = []
        self.generative_layers = []
        _z_dims = [in_dim, *z_dims]
        self._z_dims = _z_dims
        for i in range(n):
            key, k1, k2 = jax.random.split(key, 3)
            inf_h = inference_hidden_dims[i] if inference_hidden_dims else None
            gen_h = generative_hidden_dims[i] if generative_hidden_dims else None
            self.inference_layers.append(
                FFNetParams(k1, ladder_dims[i], z_dims[i] * 2, inf_h))
            self.generative_layers.append(
                FFNetParams(k2, _z_dims[i + 1], _z_dims[i] * 2, gen_h))

        self._kernel = self._build_forward_kernel()

    # --- single fused kernel: all inference + generative layers in VMEM ---
    def _build_forward_kernel(self):
        n = self.n_vae_layers
        inf_nh = [l.n_hidden for l in self.inference_layers]
        gen_nh = [l.n_hidden for l in self.generative_layers]
        lo = float(self.gen_std_bound_min)
        hi = float(self.gen_std_bound_max)
        do_gen_skip = bool(self.do_gen_skip_connection)

        def ffnet(h, hidden, head):
            # FFBlock chain: h = gelu(h) @ W + b ; split distribution head.
            # TODO(synk): cast matmul operands to bf16 once layer dims grow
            # beyond one (128,128) tile; at these dims f32 keeps us closest
            # to the torch numerics and the MXU cost is negligible.
            for (w_ref, b_ref) in hidden:
                h = jnp.dot(_gelu_tanh(h), w_ref[...],
                            preferred_element_type=jnp.float32) + b_ref[...]
            g = _gelu_tanh(h)
            w_mu, b_mu, w_raw, b_raw = head
            mu = jnp.dot(g, w_mu[...],
                         preferred_element_type=jnp.float32) + b_mu[...]
            raw = jnp.dot(g, w_raw[...],
                          preferred_element_type=jnp.float32) + b_raw[...]
            return mu, raw

        def kernel(*refs):
            pos = 0

            def take(k):
                nonlocal pos
                out = refs[pos:pos + k]
                pos += k
                return out

            # ---- inputs ----
            ladder = take(n)
            eps = take(n)
            (eps_patch,) = take(1)
            inf_params = []
            for nh in inf_nh:
                hidden = [take(2) for _ in range(nh)]
                head = take(4)
                inf_params.append((hidden, head))
            gen_params = []
            for nh in gen_nh:
                hidden = [take(2) for _ in range(nh)]
                head = take(4)
                gen_params.append((hidden, head))

            # ---- outputs ----
            mu_inf_o = take(n)
            std_inf_o = take(n)
            mu_pri_o = take(n)
            std_pri_o = take(n)
            mu_cmb_o = take(n)
            std_cmb_o = take(n)
            z_o = take(n)
            (patch_o,) = take(1)

            # ---- inference pass (bottom-up): dist -> (mu, explin std) ----
            inf_vals = []
            for i in range(n):
                mu, raw = ffnet(ladder[i][...], *inf_params[i])
                std = _explin(raw)          # inf_logstd_norm='explin'
                mu_inf_o[i][...] = mu
                std_inf_o[i][...] = std
                inf_vals.append((mu, std))

            # ---- generative pass (top-down) ----
            # TODO(synk): top_z / top_gen_prior_mu_std modes not wired in.
            mu_pri = None
            std_pri = None
            z_above = None
            for i in reversed(range(n)):
                mu_i, std_i = inf_vals[i]
                if i == n - 1:
                    mu, std = mu_i, std_i
                else:
                    # precision-weighted combine of inference & gen-prior
                    # Gaussians (matches torch: no clamping of tiny stds).
                    prec_i = pl.reciprocal(std_i * std_i, approx=True)
                    prec_g = pl.reciprocal(std_pri * std_pri, approx=True)
                    var = pl.reciprocal(prec_i + prec_g, approx=True)
                    mu = var * (mu_i * prec_i + mu_pri * prec_g)
                    std = jnp.sqrt(var)
                mu_cmb_o[i][...] = mu
                std_cmb_o[i][...] = std
                z = mu + std * eps[i][...]
                if do_gen_skip and i != n - 1:
                    # only well-defined when z_dims[i] == z_dims[i+1]
                    z = z + z_above
                z_o[i][...] = z
                z_above = z
                mu_pri, raw = ffnet(z, *gen_params[i])
                std_pri = _bounded(raw, lo, hi)   # gen_logstd_norm='bounded'
                mu_pri_o[i][...] = mu_pri
                std_pri_o[i][...] = std_pri

            patch_o[...] = mu_pri + std_pri * eps_patch[...]

        return kernel

    # --- JAX wrapper: pad activations once, run ONE pallas_call, slice back ---
    def forward(self, ladder_outputs, eps_list, eps_patch,
                top_gen_prior_mu_std=None):
        assert top_gen_prior_mu_std is None, \
            "TODO(synk): top_gen_prior_mu_std not supported in fused kernel"
        ladder_outs, _x = ladder_outputs   # x is unused (as in the torch code)
        n = self.n_vae_layers
        assert len(ladder_outs) == n
        B = ladder_outs[0].shape[0]
        Bp = _round_up(max(B, _SUBLANE), _SUBLANE)

        inputs = [_pad2d(a.astype(jnp.float32), Bp, _LANE) for a in ladder_outs]
        inputs += [_pad2d(e.astype(jnp.float32), Bp, _LANE) for e in eps_list]
        inputs.append(_pad2d(eps_patch.astype(jnp.float32), Bp, _LANE))
        for layer in self.inference_layers:
            inputs += layer.flat_params()
        for layer in self.generative_layers:
            inputs += layer.flat_params()

        n_out = 7 * n + 1
        pad_struct = jax.ShapeDtypeStruct((Bp, _LANE), jnp.float32)
        outs = pl.pallas_call(
            self._kernel,
            out_shape=tuple(pad_struct for _ in range(n_out)),
            in_specs=[_VMEM_SPEC] * len(inputs),
            out_specs=tuple([_VMEM_SPEC] * n_out),
        )(*inputs)

        pos = 0

        def take(k):
            nonlocal pos
            o = outs[pos:pos + k]
            pos += k
            return o

        mu_inf_o = take(n)
        std_inf_o = take(n)
        mu_pri_o = take(n)
        std_pri_o = take(n)
        mu_cmb_o = take(n)
        std_cmb_o = take(n)
        z_o = take(n)
        (patch_o,) = take(1)

        zd = self.z_dims
        _zd = self._z_dims
        mu_stds_inference = [
            (mu_inf_o[i][:B, :zd[i]], std_inf_o[i][:B, :zd[i]])
            for i in range(n)]
        mu_stds_gen_prior = [
            (mu_pri_o[i][:B, :_zd[i]], std_pri_o[i][:B, :_zd[i]])
            for i in range(n)] + [(None, None)]
        mu_stds_gen = (
            [(mu_pri_o[0][:B, :_zd[0]], std_pri_o[0][:B, :_zd[0]])]
            + [(mu_cmb_o[i][:B, :zd[i]], std_cmb_o[i][:B, :zd[i]])
               for i in range(n)])
        sample_zs = ([patch_o[:B, :self.in_dim]]
                     + [z_o[i][:B, :zd[i]] for i in range(n)])
        assert (len(mu_stds_gen_prior) == len(mu_stds_gen) == len(sample_zs)
                == n + 1)
        return dict(mu_stds_inference=mu_stds_inference,
                    mu_stds_gen_prior=mu_stds_gen_prior,
                    mu_stds_gen=mu_stds_gen,
                    sample_zs=sample_zs)


# ----------------------------------------------------------------------------
# main: build small deterministic example, run, check vs pure-JAX reference
# ----------------------------------------------------------------------------
if __name__ == "__main__":
    key = jax.random.PRNGKey(0)
    B = 2
    in_dim = 32
    ladder_dims = [32, 16]
    z_dims = [16, 8]
    inference_hidden_dims = [[32], [32]]
    generative_hidden_dims = [[32], [32]]

    key, kmodel = jax.random.split(key)
    model = LadderVAE(kmodel, in_dim, ladder_dims, z_dims,
                      inference_hidden_dims, generative_hidden_dims)

    key, k0, k1, kx = jax.random.split(key, 4)
    ladder_outs = [
        jax.random.normal(k0, (B, ladder_dims[0]), jnp.float32),
        jax.random.normal(k1, (B, ladder_dims[1]), jnp.float32),
    ]
    x = jax.random.normal(kx, (B, in_dim), jnp.float32)

    # Deterministic reparameterisation noise (torch.randn_like analogue).
    eps_list = []
    for zdim in z_dims:
        key, ke = jax.random.split(key)
        eps_list.append(jax.random.normal(ke, (B, zdim), jnp.float32))
    key, kp = jax.random.split(key)
    eps_patch = jax.random.normal(kp, (B, in_dim), jnp.float32)

    fwd = jax.jit(lambda louts, xx, el, ep: model.forward((louts, xx), el, ep))
    out = fwd(ladder_outs, x, eps_list, eps_patch)
    out = jax.block_until_ready(out)

    # ---------------- pure-JAX reference (same math, same eps) ----------------
    def ref_gelu(v):
        c = 0.7978845608028654
        return 0.5 * v * (1.0 + jnp.tanh(c * (v + 0.044715 * v * v * v)))

    def ref_ffnet(net, v):
        h = v
        for w, b in net.raw_blocks:
            h = jnp.dot(ref_gelu(h), w, precision=lax.Precision.HIGHEST) + b
        return h

    def ref_explin(raw):
        return jnp.where(raw > 0.0, raw + 1.0, jnp.exp(raw))

    def ref_bounded(raw):
        return model.gen_std_bound_min + (
            model.gen_std_bound_max - model.gen_std_bound_min
        ) * (1.0 / (1.0 + jnp.exp(-raw)))

    ref_inf = []
    for lx, layer in zip(ladder_outs, model.inference_layers):
        dist = ref_ffnet(layer, lx)
        zdim = dist.shape[1] // 2
        ref_inf.append((dist[:, :zdim], ref_explin(dist[:, zdim:])))

    ref_prior = [(None, None)]
    ref_gen = []
    ref_zs = []
    for i in reversed(range(model.n_vae_layers)):
        mu_g, std_g = ref_prior[0]
        mu_i, std_i = ref_inf[i]
        if mu_g is None:
            mu, std = mu_i, std_i
        else:
            var_i, var_g = std_i ** 2, std_g ** 2
            var = 1.0 / (1.0 / var_i + 1.0 / var_g)
            mu = var * (mu_i / var_i + mu_g / var_g)
            std = jnp.sqrt(var)
        ref_gen.insert(0, (mu, std))
        z = mu + std * eps_list[i]
        ref_zs.insert(0, z)
        dist = ref_ffnet(model.generative_layers[i], z)
        zdim = dist.shape[1] // 2
        ref_prior.insert(0, (dist[:, :zdim], ref_bounded(dist[:, zdim:])))
    pm, ps = ref_prior[0]
    ref_gen.insert(0, (pm, ps))
    ref_zs.insert(0, pm + ps * eps_patch)

    # ---------------- checks ----------------
    assert out['sample_zs'][0].shape == (B, in_dim)
    assert out['sample_zs'][1].shape == (B, z_dims[0])
    assert out['sample_zs'][2].shape == (B, z_dims[1])
    for a, b_ in zip(out['sample_zs'], ref_zs):
        np.testing.assert_allclose(np.asarray(a), np.asarray(b_),
                                   rtol=2e-2, atol=2e-2)
    for (mu_a, std_a), (mu_b, std_b) in zip(out['mu_stds_inference'], ref_inf):
        np.testing.assert_allclose(np.asarray(mu_a), np.asarray(mu_b),
                                   rtol=2e-2, atol=2e-2)
        np.testing.assert_allclose(np.asarray(std_a), np.asarray(std_b),
                                   rtol=2e-2, atol=2e-2)
    for (mu_a, std_a), (mu_b, std_b) in zip(out['mu_stds_gen'], ref_gen):
        np.testing.assert_allclose(np.asarray(mu_a), np.asarray(mu_b),
                                   rtol=2e-2, atol=2e-2)
        np.testing.assert_allclose(np.asarray(std_a), np.asarray(std_b),
                                   rtol=2e-2, atol=2e-2)
    for (mu_a, std_a), (mu_b, std_b) in zip(out['mu_stds_gen_prior'][:-1],
                                            ref_prior[:-1]):
        np.testing.assert_allclose(np.asarray(mu_a), np.asarray(mu_b),
                                   rtol=2e-2, atol=2e-2)
        np.testing.assert_allclose(np.asarray(std_a), np.asarray(std_b),
                                   rtol=2e-2, atol=2e-2)

    print("KERNEL_OK")
</pallas_src>

<mosaic_0001>
module attributes {stable_mosaic.version = 11 : i64} {
  func.func @kernel(%arg0: memref<8x128xf32, #tpu.memory_space<vmem>>, %arg1: memref<8x128xf32, #tpu.memory_space<vmem>>, %arg2: memref<8x128xf32, #tpu.memory_space<vmem>>, %arg3: memref<8x128xf32, #tpu.memory_space<vmem>>, %arg4: memref<8x128xf32, #tpu.memory_space<vmem>>, %arg5: memref<128x128xf32, #tpu.memory_space<vmem>>, %arg6: memref<1x128xf32, #tpu.memory_space<vmem>>, %arg7: memref<128x128xf32, #tpu.memory_space<vmem>>, %arg8: memref<1x128xf32, #tpu.memory_space<vmem>>, %arg9: memref<128x128xf32, #tpu.memory_space<vmem>>, %arg10: memref<1x128xf32, #tpu.memory_space<vmem>>, %arg11: memref<128x128xf32, #tpu.memory_space<vmem>>, %arg12: memref<1x128xf32, #tpu.memory_space<vmem>>, %arg13: memref<128x128xf32, #tpu.memory_space<vmem>>, %arg14: memref<1x128xf32, #tpu.memory_space<vmem>>, %arg15: memref<128x128xf32, #tpu.memory_space<vmem>>, %arg16: memref<1x128xf32, #tpu.memory_space<vmem>>, %arg17: memref<128x128xf32, #tpu.memory_space<vmem>>, %arg18: memref<1x128xf32, #tpu.memory_space<vmem>>, %arg19: memref<128x128xf32, #tpu.memory_space<vmem>>, %arg20: memref<1x128xf32, #tpu.memory_space<vmem>>, %arg21: memref<128x128xf32, #tpu.memory_space<vmem>>, %arg22: memref<1x128xf32, #tpu.memory_space<vmem>>, %arg23: memref<128x128xf32, #tpu.memory_space<vmem>>, %arg24: memref<1x128xf32, #tpu.memory_space<vmem>>, %arg25: memref<128x128xf32, #tpu.memory_space<vmem>>, %arg26: memref<1x128xf32, #tpu.memory_space<vmem>>, %arg27: memref<128x128xf32, #tpu.memory_space<vmem>>, %arg28: memref<1x128xf32, #tpu.memory_space<vmem>>, %arg29: memref<8x128xf32, #tpu.memory_space<vmem>>, %arg30: memref<8x128xf32, #tpu.memory_space<vmem>>, %arg31: memref<8x128xf32, #tpu.memory_space<vmem>>, %arg32: memref<8x128xf32, #tpu.memory_space<vmem>>, %arg33: memref<8x128xf32, #tpu.memory_space<vmem>>, %arg34: memref<8x128xf32, #tpu.memory_space<vmem>>, %arg35: memref<8x128xf32, #tpu.memory_space<vmem>>, %arg36: memref<8x128xf32, #tpu.memory_space<vmem>>, %arg37: memref<8x128xf32, #tpu.memory_space<vmem>>, %arg38: memref<8x128xf32, #tpu.memory_space<vmem>>, %arg39: memref<8x128xf32, #tpu.memory_space<vmem>>, %arg40: memref<8x128xf32, #tpu.memory_space<vmem>>, %arg41: memref<8x128xf32, #tpu.memory_space<vmem>>, %arg42: memref<8x128xf32, #tpu.memory_space<vmem>>, %arg43: memref<8x128xf32, #tpu.memory_space<vmem>>) attributes {dimension_semantics = [], scalar_prefetch = 0 : i64, scratch_operands = 0 : i64, tpu.core_type = #tpu.core_type<tc>} {
    %c0 = arith.constant 0 : index
    %c0_0 = arith.constant 0 : index
    %0 = vector.load %arg0[%c0, %c0_0] : memref<8x128xf32, #tpu.memory_space<vmem>>, vector<8x128xf32>
    %cst = arith.constant 5.000000e-01 : f32
    %1 = vector.broadcast %cst : f32 to vector<8x128xf32>
    %2 = arith.mulf %1, %0 : vector<8x128xf32>
    %cst_1 = arith.constant 4.471500e-02 : f32
    %3 = vector.broadcast %cst_1 : f32 to vector<8x128xf32>
    %4 = arith.mulf %3, %0 : vector<8x128xf32>
    %5 = arith.mulf %4, %0 : vector<8x128xf32>
    %6 = arith.mulf %5, %0 : vector<8x128xf32>
    %7 = arith.addf %0, %6 : vector<8x128xf32>
    %cst_2 = arith.constant 0.797884583 : f32
    %8 = vector.broadcast %cst_2 : f32 to vector<8x128xf32>
    %9 = arith.mulf %8, %7 : vector<8x128xf32>
    %10 = math.tanh %9 : vector<8x128xf32>
    %cst_3 = arith.constant 1.000000e+00 : f32
    %11 = vector.broadcast %cst_3 : f32 to vector<8x128xf32>
    %12 = arith.addf %11, %10 : vector<8x128xf32>
    %13 = arith.mulf %2, %12 : vector<8x128xf32>
    %c0_4 = arith.constant 0 : index
    %c0_5 = arith.constant 0 : index
    %14 = vector.load %arg5[%c0_4, %c0_5] : memref<128x128xf32, #tpu.memory_space<vmem>>, vector<128x128xf32>
    %cst_6 = arith.constant dense<0.000000e+00> : vector<8x128xf32>
    %15 = tpu.matmul %13, %14, %cst_6 {dimension_numbers = #tpu.dot_dimension_numbers<[1], [0], [0], [1], [0, 0, 1, 1], [], []>} : vector<8x128xf32>, vector<128x128xf32>, vector<8x128xf32> -> vector<8x128xf32>
    %c0_7 = arith.constant 0 : index
    %c0_8 = arith.constant 0 : index
    %16 = vector.load %arg6[%c0_7, %c0_8] : memref<1x128xf32, #tpu.memory_space<vmem>>, vector<1x128xf32>
    %17 = vector.broadcast %16 : vector<1x128xf32> to vector<8x128xf32>
    %18 = arith.addf %15, %17 : vector<8x128xf32>
    %cst_9 = arith.constant 5.000000e-01 : f32
    %19 = vector.broadcast %cst_9 : f32 to vector<8x128xf32>
    %20 = arith.mulf %19, %18 : vector<8x128xf32>
    %cst_10 = arith.constant 4.471500e-02 : f32
    %21 = vector.broadcast %cst_10 : f32 to vector<8x128xf32>
    %22 = arith.mulf %21, %18 : vector<8x128xf32>
    %23 = arith.mulf %22, %18 : vector<8x128xf32>
    %24 = arith.mulf %23, %18 : vector<8x128xf32>
    %25 = arith.addf %18, %24 : vector<8x128xf32>
    %cst_11 = arith.constant 0.797884583 : f32
    %26 = vector.broadcast %cst_11 : f32 to vector<8x128xf32>
    %27 = arith.mulf %26, %25 : vector<8x128xf32>
    %28 = math.tanh %27 : vector<8x128xf32>
    %cst_12 = arith.constant 1.000000e+00 : f32
    %29 = vector.broadcast %cst_12 : f32 to vector<8x128xf32>
    %30 = arith.addf %29, %28 : vector<8x128xf32>
    %31 = arith.mulf %20, %30 : vector<8x128xf32>
    %c0_13 = arith.constant 0 : index
    %c0_14 = arith.constant 0 : index
    %32 = vector.load %arg7[%c0_13, %c0_14] : memref<128x128xf32, #tpu.memory_space<vmem>>, vector<128x128xf32>
    %cst_15 = arith.constant dense<0.000000e+00> : vector<8x128xf32>
    %33 = tpu.matmul %31, %32, %cst_15 {dimension_numbers = #tpu.dot_dimension_numbers<[1], [0], [0], [1], [0, 0, 1, 1], [], []>} : vector<8x128xf32>, vector<128x128xf32>, vector<8x128xf32> -> vector<8x128xf32>
    %c0_16 = arith.constant 0 : index
    %c0_17 = arith.constant 0 : index
    %34 = vector.load %arg8[%c0_16, %c0_17] : memref<1x128xf32, #tpu.memory_space<vmem>>, vector<1x128xf32>
    %35 = vector.broadcast %34 : vector<1x128xf32> to vector<8x128xf32>
    %36 = arith.addf %33, %35 : vector<8x128xf32>
    %c0_18 = arith.constant 0 : index
    %c0_19 = arith.constant 0 : index
    %37 = vector.load %arg9[%c0_18, %c0_19] : memref<128x128xf32, #tpu.memory_space<vmem>>, vector<128x128xf32>
    %cst_20 = arith.constant dense<0.000000e+00> : vector<8x128xf32>
    %38 = tpu.matmul %31, %37, %cst_20 {dimension_numbers = #tpu.dot_dimension_numbers<[1], [0], [0], [1], [0, 0, 1, 1], [], []>} : vector<8x128xf32>, vector<128x128xf32>, vector<8x128xf32> -> vector<8x128xf32>
    %c0_21 = arith.constant 0 : index
    %c0_22 = arith.constant 0 : index
    %39 = vector.load %arg10[%c0_21, %c0_22] : memref<1x128xf32, #tpu.memory_space<vmem>>, vector<1x128xf32>
    %40 = vector.broadcast %39 : vector<1x128xf32> to vector<8x128xf32>
    %41 = arith.addf %38, %40 : vector<8x128xf32>
    %cst_23 = arith.constant 0.000000e+00 : f32
    %42 = vector.broadcast %cst_23 : f32 to vector<8x128xf32>
    %43 = arith.cmpf ogt, %41, %42 : vector<8x128xf32>
    %cst_24 = arith.constant 1.000000e+00 : f32
    %44 = vector.broadcast %cst_24 : f32 to vector<8x128xf32>
    %45 = arith.addf %41, %44 : vector<8x128xf32>
    %46 = math.exp %41 : vector<8x128xf32>
    %47 = arith.select %43, %45, %46 : vector<8x128xi1>, vector<8x128xf32>
    %c0_25 = arith.constant 0 : index
    %c0_26 = arith.constant 0 : index
    %48 = vector.load %arg29[%c0_25, %c0_26] : memref<8x128xf32, #tpu.memory_space<vmem>>, vector<8x128xf32>
    tpu.vector_store %arg29[%c0_25, %c0_26], %36 {strides = array<i32>} : memref<8x128xf32, #tpu.memory_space<vmem>>, vector<8x128xf32>,
    %c0_27 = arith.constant 0 : index
    %c0_28 = arith.constant 0 : index
    %49 = vector.load %arg31[%c0_27, %c0_28] : memref<8x128xf32, #tpu.memory_space<vmem>>, vector<8x128xf32>
    tpu.vector_store %arg31[%c0_27, %c0_28], %47 {strides = array<i32>} : memref<8x128xf32, #tpu.memory_space<vmem>>, vector<8x128xf32>,
    %c0_29 = arith.constant 0 : index
    %c0_30 = arith.constant 0 : index
    %50 = vector.load %arg1[%c0_29, %c0_30] : memref<8x128xf32, #tpu.memory_space<vmem>>, vector<8x128xf32>
    %cst_31 = arith.constant 5.000000e-01 : f32
    %51 = vector.broadcast %cst_31 : f32 to vector<8x128xf32>
    %52 = arith.mulf %51, %50 : vector<8x128xf32>
    %cst_32 = arith.constant 4.471500e-02 : f32
    %53 = vector.broadcast %cst_32 : f32 to vector<8x128xf32>
    %54 = arith.mulf %53, %50 : vector<8x128xf32>
    %55 = arith.mulf %54, %50 : vector<8x128xf32>
    %56 = arith.mulf %55, %50 : vector<8x128xf32>
    %57 = arith.addf %50, %56 : vector<8x128xf32>
    %cst_33 = arith.constant 0.797884583 : f32
    %58 = vector.broadcast %cst_33 : f32 to vector<8x128xf32>
    %59 = arith.mulf %58, %57 : vector<8x128xf32>
    %60 = math.tanh %59 : vector<8x128xf32>
    %cst_34 = arith.constant 1.000000e+00 : f32
    %61 = vector.broadcast %cst_34 : f32 to vector<8x128xf32>
    %62 = arith.addf %61, %60 : vector<8x128xf32>
    %63 = arith.mulf %52, %62 : vector<8x128xf32>
    %c0_35 = arith.constant 0 : index
    %c0_36 = arith.constant 0 : index
    %64 = vector.load %arg11[%c0_35, %c0_36] : memref<128x128xf32, #tpu.memory_space<vmem>>, vector<128x128xf32>
    %cst_37 = arith.constant dense<0.000000e+00> : vector<8x128xf32>
    %65 = tpu.matmul %63, %64, %cst_37 {dimension_numbers = #tpu.dot_dimension_numbers<[1], [0], [0], [1], [0, 0, 1, 1], [], []>} : vector<8x128xf32>, vector<128x128xf32>, vector<8x128xf32> -> vector<8x128xf32>
    %c0_38 = arith.constant 0 : index
    %c0_39 = arith.constant 0 : index
    %66 = vector.load %arg12[%c0_38, %c0_39] : memref<1x128xf32, #tpu.memory_space<vmem>>, vector<1x128xf32>
    %67 = vector.broadcast %66 : vector<1x128xf32> to vector<8x128xf32>
    %68 = arith.addf %65, %67 : vector<8x128xf32>
    %cst_40 = arith.constant 5.000000e-01 : f32
    %69 = vector.broadcast %cst_40 : f32 to vector<8x128xf32>
    %70 = arith.mulf %69, %68 : vector<8x128xf32>
    %cst_41 = arith.constant 4.471500e-02 : f32
    %71 = vector.broadcast %cst_41 : f32 to vector<8x128xf32>
    %72 = arith.mulf %71, %68 : vector<8x128xf32>
    %73 = arith.mulf %72, %68 : vector<8x128xf32>
    %74 = arith.mulf %73, %68 : vector<8x128xf32>
    %75 = arith.addf %68, %74 : vector<8x128xf32>
    %cst_42 = arith.constant 0.797884583 : f32
    %76 = vector.broadcast %cst_42 : f32 to vector<8x128xf32>
    %77 = arith.mulf %76, %75 : vector<8x128xf32>
    %78 = math.tanh %77 : vector<8x128xf32>
    %cst_43 = arith.constant 1.000000e+00 : f32
    %79 = vector.broadcast %cst_43 : f32 to vector<8x128xf32>
    %80 = arith.addf %79, %78 : vector<8x128xf32>
    %81 = arith.mulf %70, %80 : vector<8x128xf32>
    %c0_44 = arith.constant 0 : index
    %c0_45 = arith.constant 0 : index
    %82 = vector.load %arg13[%c0_44, %c0_45] : memref<128x128xf32, #tpu.memory_space<vmem>>, vector<128x128xf32>
    %cst_46 = arith.constant dense<0.000000e+00> : vector<8x128xf32>
    %83 = tpu.matmul %81, %82, %cst_46 {dimension_numbers = #tpu.dot_dimension_numbers<[1], [0], [0], [1], [0, 0, 1, 1], [], []>} : vector<8x128xf32>, vector<128x128xf32>, vector<8x128xf32> -> vector<8x128xf32>
    %c0_47 = arith.constant 0 : index
    %c0_48 = arith.constant 0 : index
    %84 = vector.load %arg14[%c0_47, %c0_48] : memref<1x128xf32, #tpu.memory_space<vmem>>, vector<1x128xf32>
    %85 = vector.broadcast %84 : vector<1x128xf32> to vector<8x128xf32>
    %86 = arith.addf %83, %85 : vector<8x128xf32>
    %c0_49 = arith.constant 0 : index
    %c0_50 = arith.constant 0 : index
    %87 = vector.load %arg15[%c0_49, %c0_50] : memref<128x128xf32, #tpu.memory_space<vmem>>, vector<128x128xf32>
    %cst_51 = arith.constant dense<0.000000e+00> : vector<8x128xf32>
    %88 = tpu.matmul %81, %87, %cst_51 {dimension_numbers = #tpu.dot_dimension_numbers<[1], [0], [0], [1], [0, 0, 1, 1], [], []>} : vector<8x128xf32>, vector<128x128xf32>, vector<8x128xf32> -> vector<8x128xf32>
    %c0_52 = arith.constant 0 : index
    %c0_53 = arith.constant 0 : index
    %89 = vector.load %arg16[%c0_52, %c0_53] : memref<1x128xf32, #tpu.memory_space<vmem>>, vector<1x128xf32>
    %90 = vector.broadcast %89 : vector<1x128xf32> to vector<8x128xf32>
    %91 = arith.addf %88, %90 : vector<8x128xf32>
    %cst_54 = arith.constant 0.000000e+00 : f32
    %92 = vector.broadcast %cst_54 : f32 to vector<8x128xf32>
    %93 = arith.cmpf ogt, %91, %92 : vector<8x128xf32>
    %cst_55 = arith.constant 1.000000e+00 : f32
    %94 = vector.broadcast %cst_55 : f32 to vector<8x128xf32>
    %95 = arith.addf %91, %94 : vector<8x128xf32>
    %96 = math.exp %91 : vector<8x128xf32>
    %97 = arith.select %93, %95, %96 : vector<8x128xi1>, vector<8x128xf32>
    %c0_56 = arith.constant 0 : index
    %c0_57 = arith.constant 0 : index
    %98 = vector.load %arg30[%c0_56, %c0_57] : memref<8x128xf32, #tpu.memory_space<vmem>>, vector<8x128xf32>
    tpu.vector_store %arg30[%c0_56, %c0_57], %86 {strides = array<i32>} : memref<8x128xf32, #tpu.memory_space<vmem>>, vector<8x128xf32>,
    %c0_58 = arith.constant 0 : index
    %c0_59 = arith.constant 0 : index
    %99 = vector.load %arg32[%c0_58, %c0_59] : memref<8x128xf32, #tpu.memory_space<vmem>>, vector<8x128xf32>
    tpu.vector_store %arg32[%c0_58, %c0_59], %97 {strides = array<i32>} : memref<8x128xf32, #tpu.memory_space<vmem>>, vector<8x128xf32>,
    %c0_60 = arith.constant 0 : index
    %c0_61 = arith.constant 0 : index
    %100 = vector.load %arg38[%c0_60, %c0_61] : memref<8x128xf32, #tpu.memory_space<vmem>>, vector<8x128xf32>
    tpu.vector_store %arg38[%c0_60, %c0_61], %86 {strides = array<i32>} : memref<8x128xf32, #tpu.memory_space<vmem>>, vector<8x128xf32>,
    %c0_62 = arith.constant 0 : index
    %c0_63 = arith.constant 0 : index
    %101 = vector.load %arg40[%c0_62, %c0_63] : memref<8x128xf32, #tpu.memory_space<vmem>>, vector<8x128xf32>
    tpu.vector_store %arg40[%c0_62, %c0_63], %97 {strides = array<i32>} : memref<8x128xf32, #tpu.memory_space<vmem>>, vector<8x128xf32>,
    %c0_64 = arith.constant 0 : index
    %c0_65 = arith.constant 0 : index
    %102 = vector.load %arg3[%c0_64, %c0_65] : memref<8x128xf32, #tpu.memory_space<vmem>>, vector<8x128xf32>
    %103 = arith.mulf %97, %102 : vector<8x128xf32>
    %104 = arith.addf %86, %103 : vector<8x128xf32>
    %c0_66 = arith.constant 0 : index
    %c0_67 = arith.constant 0 : index
    %105 = vector.load %arg42[%c0_66, %c0_67] : memref<8x128xf32, #tpu.memory_space<vmem>>, vector<8x128xf32>
    tpu.vector_store %arg42[%c0_66, %c0_67], %104 {strides = array<i32>} : memref<8x128xf32, #tpu.memory_space<vmem>>, vector<8x128xf32>,
    %cst_68 = arith.constant 5.000000e-01 : f32
    %106 = vector.broadcast %cst_68 : f32 to vector<8x128xf32>
    %107 = arith.mulf %106, %104 : vector<8x128xf32>
    %cst_69 = arith.constant 4.471500e-02 : f32
    %108 = vector.broadcast %cst_69 : f32 to vector<8x128xf32>
    %109 = arith.mulf %108, %104 : vector<8x128xf32>
    %110 = arith.mulf %109, %104 : vector<8x128xf32>
    %111 = arith.mulf %110, %104 : vector<8x128xf32>
    %112 = arith.addf %104, %111 : vector<8x128xf32>
    %cst_70 = arith.constant 0.797884583 : f32
    %113 = vector.broadcast %cst_70 : f32 to vector<8x128xf32>
    %114 = arith.mulf %113, %112 : vector<8x128xf32>
    %115 = math.tanh %114 : vector<8x128xf32>
    %cst_71 = arith.constant 1.000000e+00 : f32
    %116 = vector.broadcast %cst_71 : f32 to vector<8x128xf32>
    %117 = arith.addf %116, %115 : vector<8x128xf32>
    %118 = arith.mulf %107, %117 : vector<8x128xf32>
    %c0_72 = arith.constant 0 : index
    %c0_73 = arith.constant 0 : index
    %119 = vector.load %arg23[%c0_72, %c0_73] : memref<128x128xf32, #tpu.memory_space<vmem>>, vector<128x128xf32>
    %cst_74 = arith.constant dense<0.000000e+00> : vector<8x128xf32>
    %120 = tpu.matmul %118, %119, %cst_74 {dimension_numbers = #tpu.dot_dimension_numbers<[1], [0], [0], [1], [0, 0, 1, 1], [], []>} : vector<8x128xf32>, vector<128x128xf32>, vector<8x128xf32> -> vector<8x128xf32>
    %c0_75 = arith.constant 0 : index
    %c0_76 = arith.constant 0 : index
    %121 = vector.load %arg24[%c0_75, %c0_76] : memref<1x128xf32, #tpu.memory_space<vmem>>, vector<1x128xf32>
    %122 = vector.broadcast %121 : vector<1x128xf32> to vector<8x128xf32>
    %123 = arith.addf %120, %122 : vector<8x128xf32>
    %cst_77 = arith.constant 5.000000e-01 : f32
    %124 = vector.broadcast %cst_77 : f32 to vector<8x128xf32>
    %125 = arith.mulf %124, %123 : vector<8x128xf32>
    %cst_78 = arith.constant 4.471500e-02 : f32
    %126 = vector.broadcast %cst_78 : f32 to vector<8x128xf32>
    %127 = arith.mulf %126, %123 : vector<8x128xf32>
    %128 = arith.mulf %127, %123 : vector<8x128xf32>
    %129 = arith.mulf %128, %123 : vector<8x128xf32>
    %130 = arith.addf %123, %129 : vector<8x128xf32>
    %cst_79 = arith.constant 0.797884583 : f32
    %131 = vector.broadcast %cst_79 : f32 to vector<8x128xf32>
    %132 = arith.mulf %131, %130 : vector<8x128xf32>
    %133 = math.tanh %132 : vector<8x128xf32>
    %cst_80 = arith.constant 1.000000e+00 : f32
    %134 = vector.broadcast %cst_80 : f32 to vector<8x128xf32>
    %135 = arith.addf %134, %133 : vector<8x128xf32>
    %136 = arith.mulf %125, %135 : vector<8x128xf32>
    %c0_81 = arith.constant 0 : index
    %c0_82 = arith.constant 0 : index
    %137 = vector.load %arg25[%c0_81, %c0_82] : memref<128x128xf32, #tpu.memory_space<vmem>>, vector<128x128xf32>
    %cst_83 = arith.constant dense<0.000000e+00> : vector<8x128xf32>
    %138 = tpu.matmul %136, %137, %cst_83 {dimension_numbers = #tpu.dot_dimension_numbers<[1], [0], [0], [1], [0, 0, 1, 1], [], []>} : vector<8x128xf32>, vector<128x128xf32>, vector<8x128xf32> -> vector<8x128xf32>
    %c0_84 = arith.constant 0 : index
    %c0_85 = arith.constant 0 : index
    %139 = vector.load %arg26[%c0_84, %c0_85] : memref<1x128xf32, #tpu.memory_space<vmem>>, vector<1x128xf32>
    %140 = vector.broadcast %139 : vector<1x128xf32> to vector<8x128xf32>
    %141 = arith.addf %138, %140 : vector<8x128xf32>
    %c0_86 = arith.constant 0 : index
    %c0_87 = arith.constant 0 : index
    %142 = vector.load %arg27[%c0_86, %c0_87] : memref<128x128xf32, #tpu.memory_space<vmem>>, vector<128x128xf32>
    %cst_88 = arith.constant dense<0.000000e+00> : vector<8x128xf32>
    %143 = tpu.matmul %136, %142, %cst_88 {dimension_numbers = #tpu.dot_dimension_numbers<[1], [0], [0], [1], [0, 0, 1, 1], [], []>} : vector<8x128xf32>, vector<128x128xf32>, vector<8x128xf32> -> vector<8x128xf32>
    %c0_89 = arith.constant 0 : index
    %c0_90 = arith.constant 0 : index
    %144 = vector.load %arg28[%c0_89, %c0_90] : memref<1x128xf32, #tpu.memory_space<vmem>>, vector<1x128xf32>
    %145 = vector.broadcast %144 : vector<1x128xf32> to vector<8x128xf32>
    %146 = arith.addf %143, %145 : vector<8x128xf32>
    %cst_91 = arith.constant 0.000000e+00 : f32
    %147 = vector.broadcast %cst_91 : f32 to vector<8x128xf32>
    %148 = arith.subf %147, %146 : vector<8x128xf32>
    %149 = math.exp %148 : vector<8x128xf32>
    %cst_92 = arith.constant 1.000000e+00 : f32
    %150 = vector.broadcast %cst_92 : f32 to vector<8x128xf32>
    %151 = arith.addf %150, %149 : vector<8x128xf32>
    %152 = tpu.reciprocal %151 {approx = true} : vector<8x128xf32> -> vector<8x128xf32>
    %cst_93 = arith.constant 9.990000e-01 : f32
    %153 = vector.broadcast %cst_93 : f32 to vector<8x128xf32>
    %154 = arith.mulf %153, %152 : vector<8x128xf32>
    %cst_94 = arith.constant 1.000000e-03 : f32
    %155 = vector.broadcast %cst_94 : f32 to vector<8x128xf32>
    %156 = arith.addf %155, %154 : vector<8x128xf32>
    %c0_95 = arith.constant 0 : index
    %c0_96 = arith.constant 0 : index
    %157 = vector.load %arg34[%c0_95, %c0_96] : memref<8x128xf32, #tpu.memory_space<vmem>>, vector<8x128xf32>
    tpu.vector_store %arg34[%c0_95, %c0_96], %141 {strides = array<i32>} : memref<8x128xf32, #tpu.memory_space<vmem>>, vector<8x128xf32>,
    %c0_97 = arith.constant 0 : index
    %c0_98 = arith.constant 0 : index
    %158 = vector.load %arg36[%c0_97, %c0_98] : memref<8x128xf32, #tpu.memory_space<vmem>>, vector<8x128xf32>
    tpu.vector_store %arg36[%c0_97, %c0_98], %156 {strides = array<i32>} : memref<8x128xf32, #tpu.memory_space<vmem>>, vector<8x128xf32>,
    %159 = arith.mulf %47, %47 : vector<8x128xf32>
    %160 = tpu.reciprocal %159 {approx = true} : vector<8x128xf32> -> vector<8x128xf32>
    %161 = arith.mulf %156, %156 : vector<8x128xf32>
    %162 = tpu.reciprocal %161 {approx = true} : vector<8x128xf32> -> vector<8x128xf32>
    %163 = arith.addf %160, %162 : vector<8x128xf32>
    %164 = tpu.reciprocal %163 {approx = true} : vector<8x128xf32> -> vector<8x128xf32>
    %165 = arith.mulf %36, %160 : vector<8x128xf32>
    %166 = arith.mulf %141, %162 : vector<8x128xf32>
    %167 = arith.addf %165, %166 : vector<8x128xf32>
    %168 = arith.mulf %164, %167 : vector<8x128xf32>
    %169 = math.sqrt %164 : vector<8x128xf32>
    %c0_99 = arith.constant 0 : index
    %c0_100 = arith.constant 0 : index
    %170 = vector.load %arg37[%c0_99, %c0_100] : memref<8x128xf32, #tpu.memory_space<vmem>>, vector<8x128xf32>
    tpu.vector_store %arg37[%c0_99, %c0_100], %168 {strides = array<i32>} : memref<8x128xf32, #tpu.memory_space<vmem>>, vector<8x128xf32>,
    %c0_101 = arith.constant 0 : index
    %c0_102 = arith.constant 0 : index
    %171 = vector.load %arg39[%c0_101, %c0_102] : memref<8x128xf32, #tpu.memory_space<vmem>>, vector<8x128xf32>
    tpu.vector_store %arg39[%c0_101, %c0_102], %169 {strides = array<i32>} : memref<8x128xf32, #tpu.memory_space<vmem>>, vector<8x128xf32>,
    %c0_103 = arith.constant 0 : index
    %c0_104 = arith.constant 0 : index
    %172 = vector.load %arg2[%c0_103, %c0_104] : memref<8x128xf32, #tpu.memory_space<vmem>>, vector<8x128xf32>
    %173 = arith.mulf %169, %172 : vector<8x128xf32>
    %174 = arith.addf %168, %173 : vector<8x128xf32>
    %c0_105 = arith.constant 0 : index
    %c0_106 = arith.constant 0 : index
    %175 = vector.load %arg41[%c0_105, %c0_106] : memref<8x128xf32, #tpu.memory_space<vmem>>, vector<8x128xf32>
    tpu.vector_store %arg41[%c0_105, %c0_106], %174 {strides = array<i32>} : memref<8x128xf32, #tpu.memory_space<vmem>>, vector<8x128xf32>,
    %cst_107 = arith.constant 5.000000e-01 : f32
    %176 = vector.broadcast %cst_107 : f32 to vector<8x128xf32>
    %177 = arith.mulf %176, %174 : vector<8x128xf32>
    %cst_108 = arith.constant 4.471500e-02 : f32
    %178 = vector.broadcast %cst_108 : f32 to vector<8x128xf32>
    %179 = arith.mulf %178, %174 : vector<8x128xf32>
    %180 = arith.mulf %179, %174 : vector<8x128xf32>
    %181 = arith.mulf %180, %174 : vector<8x128xf32>
    %182 = arith.addf %174, %181 : vector<8x128xf32>
    %cst_109 = arith.constant 0.797884583 : f32
    %183 = vector.broadcast %cst_109 : f32 to vector<8x128xf32>
    %184 = arith.mulf %183, %182 : vector<8x128xf32>
    %185 = math.tanh %184 : vector<8x128xf32>
    %cst_110 = arith.constant 1.000000e+00 : f32
    %186 = vector.broadcast %cst_110 : f32 to vector<8x128xf32>
    %187 = arith.addf %186, %185 : vector<8x128xf32>
    %188 = arith.mulf %177, %187 : vector<8x128xf32>
    %c0_111 = arith.constant 0 : index
    %c0_112 = arith.constant 0 : index
    %189 = vector.load %arg17[%c0_111, %c0_112] : memref<128x128xf32, #tpu.memory_space<vmem>>, vector<128x128xf32>
    %cst_113 = arith.constant dense<0.000000e+00> : vector<8x128xf32>
    %190 = tpu.matmul %188, %189, %cst_113 {dimension_numbers = #tpu.dot_dimension_numbers<[1], [0], [0], [1], [0, 0, 1, 1], [], []>} : vector<8x128xf32>, vector<128x128xf32>, vector<8x128xf32> -> vector<8x128xf32>
    %c0_114 = arith.constant 0 : index
    %c0_115 = arith.constant 0 : index
    %191 = vector.load %arg18[%c0_114, %c0_115] : memref<1x128xf32, #tpu.memory_space<vmem>>, vector<1x128xf32>
    %192 = vector.broadcast %191 : vector<1x128xf32> to vector<8x128xf32>
    %193 = arith.addf %190, %192 : vector<8x128xf32>
    %cst_116 = arith.constant 5.000000e-01 : f32
    %194 = vector.broadcast %cst_116 : f32 to vector<8x128xf32>
    %195 = arith.mulf %194, %193 : vector<8x128xf32>
    %cst_117 = arith.constant 4.471500e-02 : f32
    %196 = vector.broadcast %cst_117 : f32 to vector<8x128xf32>
    %197 = arith.mulf %196, %193 : vector<8x128xf32>
    %198 = arith.mulf %197, %193 : vector<8x128xf32>
    %199 = arith.mulf %198, %193 : vector<8x128xf32>
    %200 = arith.addf %193, %199 : vector<8x128xf32>
    %cst_118 = arith.constant 0.797884583 : f32
    %201 = vector.broadcast %cst_118 : f32 to vector<8x128xf32>
    %202 = arith.mulf %201, %200 : vector<8x128xf32>
    %203 = math.tanh %202 : vector<8x128xf32>
    %cst_119 = arith.constant 1.000000e+00 : f32
    %204 = vector.broadcast %cst_119 : f32 to vector<8x128xf32>
    %205 = arith.addf %204, %203 : vector<8x128xf32>
    %206 = arith.mulf %195, %205 : vector<8x128xf32>
    %c0_120 = arith.constant 0 : index
    %c0_121 = arith.constant 0 : index
    %207 = vector.load %arg19[%c0_120, %c0_121] : memref<128x128xf32, #tpu.memory_space<vmem>>, vector<128x128xf32>
    %cst_122 = arith.constant dense<0.000000e+00> : vector<8x128xf32>
    %208 = tpu.matmul %206, %207, %cst_122 {dimension_numbers = #tpu.dot_dimension_numbers<[1], [0], [0], [1], [0, 0, 1, 1], [], []>} : vector<8x128xf32>, vector<128x128xf32>, vector<8x128xf32> -> vector<8x128xf32>
    %c0_123 = arith.constant 0 : index
    %c0_124 = arith.constant 0 : index
    %209 = vector.load %arg20[%c0_123, %c0_124] : memref<1x128xf32, #tpu.memory_space<vmem>>, vector<1x128xf32>
    %210 = vector.broadcast %209 : vector<1x128xf32> to vector<8x128xf32>
    %211 = arith.addf %208, %210 : vector<8x128xf32>
    %c0_125 = arith.constant 0 : index
    %c0_126 = arith.constant 0 : index
    %212 = vector.load %arg21[%c0_125, %c0_126] : memref<128x128xf32, #tpu.memory_space<vmem>>, vector<128x128xf32>
    %cst_127 = arith.constant dense<0.000000e+00> : vector<8x128xf32>
    %213 = tpu.matmul %206, %212, %cst_127 {dimension_numbers = #tpu.dot_dimension_numbers<[1], [0], [0], [1], [0, 0, 1, 1], [], []>} : vector<8x128xf32>, vector<128x128xf32>, vector<8x128xf32> -> vector<8x128xf32>
    %c0_128 = arith.constant 0 : index
    %c0_129 = arith.constant 0 : index
    %214 = vector.load %arg22[%c0_128, %c0_129] : memref<1x128xf32, #tpu.memory_space<vmem>>, vector<1x128xf32>
    %215 = vector.broadcast %214 : vector<1x128xf32> to vector<8x128xf32>
    %216 = arith.addf %213, %215 : vector<8x128xf32>
    %cst_130 = arith.constant 0.000000e+00 : f32
    %217 = vector.broadcast %cst_130 : f32 to vector<8x128xf32>
    %218 = arith.subf %217, %216 : vector<8x128xf32>
    %219 = math.exp %218 : vector<8x128xf32>
    %cst_131 = arith.constant 1.000000e+00 : f32
    %220 = vector.broadcast %cst_131 : f32 to vector<8x128xf32>
    %221 = arith.addf %220, %219 : vector<8x128xf32>
    %222 = tpu.reciprocal %221 {approx = true} : vector<8x128xf32> -> vector<8x128xf32>
    %cst_132 = arith.constant 9.990000e-01 : f32
    %223 = vector.broadcast %cst_132 : f32 to vector<8x128xf32>
    %224 = arith.mulf %223, %222 : vector<8x128xf32>
    %cst_133 = arith.constant 1.000000e-03 : f32
    %225 = vector.broadcast %cst_133 : f32 to vector<8x128xf32>
    %226 = arith.addf %225, %224 : vector<8x128xf32>
    %c0_134 = arith.constant 0 : index
    %c0_135 = arith.constant 0 : index
    %227 = vector.load %arg33[%c0_134, %c0_135] : memref<8x128xf32, #tpu.memory_space<vmem>>, vector<8x128xf32>
    tpu.vector_store %arg33[%c0_134, %c0_135], %211 {strides = array<i32>} : memref<8x128xf32, #tpu.memory_space<vmem>>, vector<8x128xf32>,
    %c0_136 = arith.constant 0 : index
    %c0_137 = arith.constant 0 : index
    %228 = vector.load %arg35[%c0_136, %c0_137] : memref<8x128xf32, #tpu.memory_space<vmem>>, vector<8x128xf32>
    tpu.vector_store %arg35[%c0_136, %c0_137], %226 {strides = array<i32>} : memref<8x128xf32, #tpu.memory_space<vmem>>, vector<8x128xf32>,
    %c0_138 = arith.constant 0 : index
    %c0_139 = arith.constant 0 : index
    %229 = vector.load %arg4[%c0_138, %c0_139] : memref<8x128xf32, #tpu.memory_space<vmem>>, vector<8x128xf32>
    %230 = arith.mulf %226, %229 : vector<8x128xf32>
    %231 = arith.addf %211, %230 : vector<8x128xf32>
    %c0_140 = arith.constant 0 : index
    %c0_141 = arith.constant 0 : index
    %232 = vector.load %arg43[%c0_140, %c0_141] : memref<8x128xf32, #tpu.memory_space<vmem>>, vector<8x128xf32>
    tpu.vector_store %arg43[%c0_140, %c0_141], %231 {strides = array<i32>} : memref<8x128xf32, #tpu.memory_space<vmem>>, vector<8x128xf32>,
    return
  }
}

</mosaic_0001>

<llo_original>
// kernel: _lambda_.1
$region0: #{_lambda_.1}
  #allocation0 [shape = 'u32[]', space=smem, size = 0x4, offset = 0x4, fixed_abs, tag = 'smem constant byte address 0x4 - core index']
  #allocation1 [shape = 'u32[144,128]{1,0:T(1,128)}', space=vmem, size = 0x12000, scoped, tag = 'internal scratch']
  %s0 = inlined_call_operand.smem [shape: u32[44], index: -1, kind: input, shape index: {}]
  %s1 = sld [smem:[%s0]]
  %s2 = scalar_lea.smem %s0, 1
  %s3 = sld [smem:[%s2]]
  %s4 = scalar_lea.smem %s0, 2
  %s5 = sld [smem:[%s4]]
  %s6 = scalar_lea.smem %s0, 3
  %s7 = sld [smem:[%s6]]
  %s8 = scalar_lea.smem %s0, 4
  %s9 = sld [smem:[%s8]]
  %s10 = scalar_lea.smem %s0, 5
  %s11 = sld [smem:[%s10]]
  %s12 = scalar_lea.smem %s0, 6
  %s13 = sld [smem:[%s12]]
  %s14 = scalar_lea.smem %s0, 7
  %s15 = sld [smem:[%s14]]
  %s16 = scalar_lea.smem %s0, 8
  %s17 = sld [smem:[%s16]]
  %s18 = scalar_lea.smem %s0, 9
  %s19 = sld [smem:[%s18]]
  %s20 = scalar_lea.smem %s0, 10
  %s21 = sld [smem:[%s20]]
  %s22 = scalar_lea.smem %s0, 11
  %s23 = sld [smem:[%s22]]
  %s24 = scalar_lea.smem %s0, 12
  %s25 = sld [smem:[%s24]]
  %s26 = scalar_lea.smem %s0, 13
  %s27 = sld [smem:[%s26]]
  %s28 = scalar_lea.smem %s0, 14
  %s29 = sld [smem:[%s28]]
  %s30 = scalar_lea.smem %s0, 15
  %s31 = sld [smem:[%s30]]
  %s32 = scalar_lea.smem %s0, 16
  %s33 = sld [smem:[%s32]]
  %s34 = scalar_lea.smem %s0, 17
  %s35 = sld [smem:[%s34]]
  %s36 = scalar_lea.smem %s0, 18
  %s37 = sld [smem:[%s36]]
  %s38 = scalar_lea.smem %s0, 19
  %s39 = sld [smem:[%s38]]
  %s40 = scalar_lea.smem %s0, 20
  %s41 = sld [smem:[%s40]]
  %s42 = scalar_lea.smem %s0, 21
  %s43 = sld [smem:[%s42]]
  %s44 = scalar_lea.smem %s0, 22
  %s45 = sld [smem:[%s44]]
  %s46 = scalar_lea.smem %s0, 23
  %s47 = sld [smem:[%s46]]
  %s48 = scalar_lea.smem %s0, 24
  %s49 = sld [smem:[%s48]]
  %s50 = scalar_lea.smem %s0, 25
  %s51 = sld [smem:[%s50]]
  %s52 = scalar_lea.smem %s0, 26
  %s53 = sld [smem:[%s52]]
  %s54 = scalar_lea.smem %s0, 27
  %s55 = sld [smem:[%s54]]
  %s56 = scalar_lea.smem %s0, 28
  %s57 = sld [smem:[%s56]]
  %s58 = scalar_lea.smem %s0, 29
  %s59 = sld [smem:[%s58]]
  %s60 = scalar_lea.smem %s0, 30
  %s61 = sld [smem:[%s60]]
  %s62 = scalar_lea.smem %s0, 31
  %s63 = sld [smem:[%s62]]
  %s64 = scalar_lea.smem %s0, 32
  %s65 = sld [smem:[%s64]]
  %s66 = scalar_lea.smem %s0, 33
  %s67 = sld [smem:[%s66]]
  %s68 = scalar_lea.smem %s0, 34
  %s69 = sld [smem:[%s68]]
  %s70 = scalar_lea.smem %s0, 35
  %s71 = sld [smem:[%s70]]
  %s72 = scalar_lea.smem %s0, 36
  %s73 = sld [smem:[%s72]]
  %s74 = scalar_lea.smem %s0, 37
  %s75 = sld [smem:[%s74]]
  %s76 = scalar_lea.smem %s0, 38
  %s77 = sld [smem:[%s76]]
  %s78 = scalar_lea.smem %s0, 39
  %s79 = sld [smem:[%s78]]
  %s80 = scalar_lea.smem %s0, 40
  %s81 = sld [smem:[%s80]]
  %s82 = scalar_lea.smem %s0, 41
  %s83 = sld [smem:[%s82]]
  %s84 = scalar_lea.smem %s0, 42
  %s85 = sld [smem:[%s84]]
  %s86 = scalar_lea.smem %s0, 43
  %s87 = sld [smem:[%s86]]
  %88 = xla_tuple %s59, %s61, %s63, %s65, %s67, %s69, %s71, %s73, %s75, %s77, %s79, %s81, %s83, %s85, %s87
  %s89 = sld [smem:[#allocation0]]
  $region282: #{_lambda_.1} parent=0
    _
  %s91 = ssub.s32 1, %s89
  %s92 = scalar_select 0, %s91, %s89
  $region1: #{_lambda_.1} parent=0
    #allocation2 [shape = 'u8[65536]{0}', space=vmem, size = 0x10000, scoped, tag = 'input window, operand 5, single buffered']
    #allocation3 [shape = 's32[1]{0}', space=sflag, size = 0x4, scoped, tag = 'scoped memory for _lambda_.1']
    #allocation4 [shape = 'u8[65536]{0}', space=vmem, size = 0x10000, scoped, tag = 'input window, operand 7, single buffered']
    #allocation5 [shape = 's32[1]{0}', space=sflag, size = 0x4, scoped, tag = 'scoped memory for _lambda_.1']
    #allocation6 [shape = 'u8[65536]{0}', space=vmem, size = 0x10000, scoped, tag = 'input window, operand 9, single buffered']
    #allocation7 [shape = 'u8[65536]{0}', space=vmem, size = 0x10000, scoped, tag = 'input window, operand 11, single buffered']
    #allocation8 [shape = 's32[1]{0}', space=sflag, size = 0x4, scoped, tag = 'scoped memory for _lambda_.1']
    #allocation9 [shape = 'u8[65536]{0}', space=vmem, size = 0x10000, scoped, tag = 'input window, operand 13, single buffered']
    #allocation10 [shape = 'u8[65536]{0}', space=vmem, size = 0x10000, scoped, tag = 'input window, operand 15, single buffered']
    #allocation11 [shape = 's32[1]{0}', space=sflag, size = 0x4, scoped, tag = 'scoped memory for _lambda_.1']
    #allocation12 [shape = 'u8[65536]{0}', space=vmem, size = 0x10000, scoped, tag = 'input window, operand 17, single buffered']
    #allocation13 [shape = 'u8[65536]{0}', space=vmem, size = 0x10000, scoped, tag = 'input window, operand 19, single buffered']
    #allocation14 [shape = 's32[1]{0}', space=sflag, size = 0x4, scoped, tag = 'scoped memory for _lambda_.1']
    #allocation15 [shape = 'u8[65536]{0}', space=vmem, size = 0x10000, scoped, tag = 'input window, operand 21, single buffered']
    #allocation16 [shape = 'u8[65536]{0}', space=vmem, size = 0x10000, scoped, tag = 'input window, operand 23, single buffered']
    #allocation17 [shape = 's32[1]{0}', space=sflag, size = 0x4, scoped, tag = 'scoped memory for _lambda_.1']
    #allocation18 [shape = 'u8[65536]{0}', space=vmem, size = 0x10000, scoped, tag = 'input window, operand 25, single buffered']
    %93 = vsyncpa [#allocation3], 0
    %94 = vsyncpa [#allocation5], 0
    %95 = vsyncpa [#allocation8], 0
    %96 = vsyncpa [#allocation11], 0
    %97 = vsyncpa [#allocation14], 0
    %98 = vsyncpa [#allocation17], 0
    // Predicated region
    $region2: #{_lambda_.1} parent=1 // pred_check
      _
    $region3: #{_lambda_.1} parent=1 // pred_check_branch
      %100 = sbr.rel (0) target = $region5
    $region4: #{_lambda_.1} parent=1 // pred_region
      _
    $region5: #{_lambda_.1} parent=1 // pred_fallthru
      _
    // Predicated region
    $region6: #{_lambda_.1} parent=1 // pred_check
      _
    $region7: #{_lambda_.1} parent=1 // pred_check_branch
      %102 = sbr.rel (0) target = $region9
    $region8: #{_lambda_.1} parent=1 // pred_region
      _
    $region9: #{_lambda_.1} parent=1 // pred_fallthru
      _
    // Predicated region
    $region10: #{_lambda_.1} parent=1 // pred_check
      _
    $region11: #{_lambda_.1} parent=1 // pred_check_branch
      %104 = sbr.rel (0) target = $region13
    $region12: #{_lambda_.1} parent=1 // pred_region
      _
    $region13: #{_lambda_.1} parent=1 // pred_fallthru
      _
    // Predicated region
    $region14: #{_lambda_.1} parent=1 // pred_check
      _
    $region15: #{_lambda_.1} parent=1 // pred_check_branch
      %106 = sbr.rel (0) target = $region17
    $region16: #{_lambda_.1} parent=1 // pred_region
      _
    $region17: #{_lambda_.1} parent=1 // pred_fallthru
      _
    // Predicated region
    $region18: #{_lambda_.1} parent=1 // pred_check
      _
    $region19: #{_lambda_.1} parent=1 // pred_check_branch
      %108 = sbr.rel (0) target = $region21
    $region20: #{_lambda_.1} parent=1 // pred_region
      _
    $region21: #{_lambda_.1} parent=1 // pred_fallthru
      _
    // Predicated region
    $region22: #{_lambda_.1} parent=1 // pred_check
      _
    $region23: #{_lambda_.1} parent=1 // pred_check_branch
      %110 = sbr.rel (0) target = $region25
    $region24: #{_lambda_.1} parent=1 // pred_region
      %s112 = ssub.s32 2048, 2048
      %113 = vsyncadd [#allocation3], %s112
      %s114 = sshll.u32 [#allocation2], 4
      %s115 = int_to_ptr.vmem [resolvable:$true] %s114
      %120 = dma.hbm_to_vmem [thread:$0]  %s11, 2048, %s115, [#allocation3], 128, 128, 8
    $region25: #{_lambda_.1} parent=1 // pred_fallthru
      _
    // Predicated region
    $region26: #{_lambda_.1} parent=1 // pred_check
      _
    $region27: #{_lambda_.1} parent=1 // pred_check_branch
      %122 = sbr.rel (0) target = $region29
    $region28: #{_lambda_.1} parent=1 // pred_region
      _
    $region29: #{_lambda_.1} parent=1 // pred_fallthru
      _
    // Predicated region
    $region30: #{_lambda_.1} parent=1 // pred_check
      _
    $region31: #{_lambda_.1} parent=1 // pred_check_branch
      %124 = sbr.rel (0) target = $region33
    $region32: #{_lambda_.1} parent=1 // pred_region
      %s126 = ssub.s32 2048, 2048
      %127 = vsyncadd [#allocation5], %s126
      %s128 = sshll.u32 [#allocation4], 4
      %s129 = int_to_ptr.vmem [resolvable:$true] %s128
      %134 = dma.hbm_to_vmem [thread:$0]  %s15, 2048, %s129, [#allocation5], 128, 128, 8
    $region33: #{_lambda_.1} parent=1 // pred_fallthru
      _
    // Predicated region
    $region34: #{_lambda_.1} parent=1 // pred_check
      _
    $region35: #{_lambda_.1} parent=1 // pred_check_branch
      %136 = sbr.rel (0) target = $region37
    $region36: #{_lambda_.1} parent=1 // pred_region
      _
    $region37: #{_lambda_.1} parent=1 // pred_fallthru
      _
    // Predicated region
    $region38: #{_lambda_.1} parent=1 // pred_check
      _
    $region39: #{_lambda_.1} parent=1 // pred_check_branch
      %138 = sbr.rel (0) target = $region41
    $region40: #{_lambda_.1} parent=1 // pred_region
      %s140 = ssub.s32 2048, 2048
      %141 = vsyncadd [#allocation5], %s140
      %s142 = sshll.u32 [#allocation6], 4
      %s143 = int_to_ptr.vmem [resolvable:$true] %s142
      %148 = dma.hbm_to_vmem [thread:$0]  %s19, 2048, %s143, [#allocation5], 128, 128, 8
    $region41: #{_lambda_.1} parent=1 // pred_fallthru
      _
    // Predicated region
    $region42: #{_lambda_.1} parent=1 // pred_check
      _
    $region43: #{_lambda_.1} parent=1 // pred_check_branch
      %150 = sbr.rel (0) target = $region45
    $region44: #{_lambda_.1} parent=1 // pred_region
      _
    $region45: #{_lambda_.1} parent=1 // pred_fallthru
      _
    // Predicated region
    $region46: #{_lambda_.1} parent=1 // pred_check
      _
    $region47: #{_lambda_.1} parent=1 // pred_check_branch
      %152 = sbr.rel (0) target = $region49
    $region48: #{_lambda_.1} parent=1 // pred_region
      %s154 = ssub.s32 2048, 2048
      %155 = vsyncadd [#allocation8], %s154
      %s156 = sshll.u32 [#allocation7], 4
      %s157 = int_to_ptr.vmem [resolvable:$true] %s156
      %162 = dma.hbm_to_vmem [thread:$0]  %s23, 2048, %s157, [#allocation8], 128, 128, 8
    $region49: #{_lambda_.1} parent=1 // pred_fallthru
      _
    // Predicated region
    $region50: #{_lambda_.1} parent=1 // pred_check
      _
    $region51: #{_lambda_.1} parent=1 // pred_check_branch
      %164 = sbr.rel (0) target = $region53
    $region52: #{_lambda_.1} parent=1 // pred_region
      _
    $region53: #{_lambda_.1} parent=1 // pred_fallthru
      _
    // Predicated region
    $region54: #{_lambda_.1} parent=1 // pred_check
      _
    $region55: #{_lambda_.1} parent=1 // pred_check_branch
      %166 = sbr.rel (0) target = $region57
    $region56: #{_lambda_.1} parent=1 // pred_region
      %s168 = ssub.s32 2048, 2048
      %169 = vsyncadd [#allocation8], %s168
      %s170 = sshll.u32 [#allocation9], 4
      %s171 = int_to_ptr.vmem [resolvable:$true] %s170
      %176 = dma.hbm_to_vmem [thread:$0]  %s27, 2048, %s171, [#allocation8], 128, 128, 8
    $region57: #{_lambda_.1} parent=1 // pred_fallthru
      _
    // Predicated region
    $region58: #{_lambda_.1} parent=1 // pred_check
      _
    $region59: #{_lambda_.1} parent=1 // pred_check_branch
      %178 = sbr.rel (0) target = $region61
    $region60: #{_lambda_.1} parent=1 // pred_region
      _
    $region61: #{_lambda_.1} parent=1 // pred_fallthru
      _
    // Predicated region
    $region62: #{_lambda_.1} parent=1 // pred_check
      _
    $region63: #{_lambda_.1} parent=1 // pred_check_branch
      %180 = sbr.rel (0) target = $region65
    $region64: #{_lambda_.1} parent=1 // pred_region
      %s182 = ssub.s32 2048, 2048
      %183 = vsyncadd [#allocation11], %s182
      %s184 = sshll.u32 [#allocation10], 4
      %s185 = int_to_ptr.vmem [resolvable:$true] %s184
      %190 = dma.hbm_to_vmem [thread:$0]  %s31, 2048, %s185, [#allocation11], 128, 128, 8
    $region65: #{_lambda_.1} parent=1 // pred_fallthru
      _
    // Predicated region
    $region66: #{_lambda_.1} parent=1 // pred_check
      _
    $region67: #{_lambda_.1} parent=1 // pred_check_branch
      %192 = sbr.rel (0) target = $region69
    $region68: #{_lambda_.1} parent=1 // pred_region
      _
    $region69: #{_lambda_.1} parent=1 // pred_fallthru
      _
    // Predicated region
    $region70: #{_lambda_.1} parent=1 // pred_check
      _
    $region71: #{_lambda_.1} parent=1 // pred_check_branch
      %194 = sbr.rel (0) target = $region73
    $region72: #{_lambda_.1} parent=1 // pred_region
      %s196 = ssub.s32 2048, 2048
      %197 = vsyncadd [#allocation11], %s196
      %s198 = sshll.u32 [#allocation12], 4
      %s199 = int_to_ptr.vmem [resolvable:$true] %s198
      %204 = dma.hbm_to_vmem [thread:$0]  %s35, 2048, %s199, [#allocation11], 128, 128, 8
    $region73: #{_lambda_.1} parent=1 // pred_fallthru
      _
    // Predicated region
    $region74: #{_lambda_.1} parent=1 // pred_check
      _
    $region75: #{_lambda_.1} parent=1 // pred_check_branch
      %206 = sbr.rel (0) target = $region77
    $region76: #{_lambda_.1} parent=1 // pred_region
      _
    $region77: #{_lambda_.1} parent=1 // pred_fallthru
      _
    // Predicated region
    $region78: #{_lambda_.1} parent=1 // pred_check
      _
    $region79: #{_lambda_.1} parent=1 // pred_check_branch
      %208 = sbr.rel (0) target = $region81
    $region80: #{_lambda_.1} parent=1 // pred_region
      %s210 = ssub.s32 2048, 2048
      %211 = vsyncadd [#allocation14], %s210
      %s212 = sshll.u32 [#allocation13], 4
      %s213 = int_to_ptr.vmem [resolvable:$true] %s212
      %218 = dma.hbm_to_vmem [thread:$0]  %s39, 2048, %s213, [#allocation14], 128, 128, 8
    $region81: #{_lambda_.1} parent=1 // pred_fallthru
      _
    // Predicated region
    $region82: #{_lambda_.1} parent=1 // pred_check
      _
    $region83: #{_lambda_.1} parent=1 // pred_check_branch
      %220 = sbr.rel (0) target = $region85
    $region84: #{_lambda_.1} parent=1 // pred_region
      _
    $region85: #{_lambda_.1} parent=1 // pred_fallthru
      _
    // Predicated region
    $region86: #{_lambda_.1} parent=1 // pred_check
      _
    $region87: #{_lambda_.1} parent=1 // pred_check_branch
      %222 = sbr.rel (0) target = $region89
    $region88: #{_lambda_.1} parent=1 // pred_region
      %s224 = ssub.s32 2048, 2048
      %225 = vsyncadd [#allocation14], %s224
      %s226 = sshll.u32 [#allocation15], 4
      %s227 = int_to_ptr.vmem [resolvable:$true] %s226
      %232 = dma.hbm_to_vmem [thread:$0]  %s43, 2048, %s227, [#allocation14], 128, 128, 8
    $region89: #{_lambda_.1} parent=1 // pred_fallthru
      _
    // Predicated region
    $region90: #{_lambda_.1} parent=1 // pred_check
      _
    $region91: #{_lambda_.1} parent=1 // pred_check_branch
      %234 = sbr.rel (0) target = $region93
    $region92: #{_lambda_.1} parent=1 // pred_region
      _
    $region93: #{_lambda_.1} parent=1 // pred_fallthru
      _
    // Predicated region
    $region94: #{_lambda_.1} parent=1 // pred_check
      _
    $region95: #{_lambda_.1} parent=1 // pred_check_branch
      %236 = sbr.rel (0) target = $region97
    $region96: #{_lambda_.1} parent=1 // pred_region
      %s238 = ssub.s32 2048, 2048
      %239 = vsyncadd [#allocation17], %s238
      %s240 = sshll.u32 [#allocation16], 4
      %s241 = int_to_ptr.vmem [resolvable:$true] %s240
      %246 = dma.hbm_to_vmem [thread:$0]  %s47, 2048, %s241, [#allocation17], 128, 128, 8
    $region97: #{_lambda_.1} parent=1 // pred_fallthru
      _
    // Predicated region
    $region98: #{_lambda_.1} parent=1 // pred_check
      _
    $region99: #{_lambda_.1} parent=1 // pred_check_branch
      %248 = sbr.rel (0) target = $region101
    $region100: #{_lambda_.1} parent=1 // pred_region
      _
    $region101: #{_lambda_.1} parent=1 // pred_fallthru
      _
    // Predicated region
    $region102: #{_lambda_.1} parent=1 // pred_check
      _
    $region103: #{_lambda_.1} parent=1 // pred_check_branch
      %250 = sbr.rel (0) target = $region105
    $region104: #{_lambda_.1} parent=1 // pred_region
      %s252 = ssub.s32 2048, 2048
      %253 = vsyncadd [#allocation17], %s252
      %s254 = sshll.u32 [#allocation18], 4
      %s255 = int_to_ptr.vmem [resolvable:$true] %s254
      %260 = dma.hbm_to_vmem [thread:$0]  %s51, 2048, %s255, [#allocation17], 128, 128, 8
    $region105: #{_lambda_.1} parent=1 // pred_fallthru
      _
    // Predicated region
    $region106: #{_lambda_.1} parent=1 // pred_check
      _
    $region107: #{_lambda_.1} parent=1 // pred_check_branch
      %262 = sbr.rel (0) target = $region109
    $region108: #{_lambda_.1} parent=1 // pred_region
      _
    $region109: #{_lambda_.1} parent=1 // pred_fallthru
      _
    // Predicated region
    $region110: #{_lambda_.1} parent=1 // pred_check
      _
    $region111: #{_lambda_.1} parent=1 // pred_check_branch
      %264 = sbr.rel (0) target = $region113
    $region112: #{_lambda_.1} parent=1 // pred_region
      _
    $region113: #{_lambda_.1} parent=1 // pred_fallthru
      _
    // Predicated region
    $region114: #{_lambda_.1} parent=1 // pred_check
      _
    $region115: #{_lambda_.1} parent=1 // pred_check_branch
      %266 = sbr.rel (0) target = $region117
    $region116: #{_lambda_.1} parent=1 // pred_region
      _
    $region117: #{_lambda_.1} parent=1 // pred_fallthru
      _
    // Predicated region
    $region118: #{_lambda_.1} parent=1 // pred_check
      _
    $region119: #{_lambda_.1} parent=1 // pred_check_branch
      %268 = sbr.rel (0) target = $region121
    $region120: #{_lambda_.1} parent=1 // pred_region
      %269 = dma.done [#allocation3], 2048
    $region121: #{_lambda_.1} parent=1 // pred_fallthru
      _
    // Predicated region
    $region122: #{_lambda_.1} parent=1 // pred_check
      _
    $region123: #{_lambda_.1} parent=1 // pred_check_branch
      %271 = sbr.rel (0) target = $region125
    $region124: #{_lambda_.1} parent=1 // pred_region
      %272 = dma.done [#allocation5], 2048
    $region125: #{_lambda_.1} parent=1 // pred_fallthru
      _
    // Predicated region
    $region126: #{_lambda_.1} parent=1 // pred_check
      _
    $region127: #{_lambda_.1} parent=1 // pred_check_branch
      %274 = sbr.rel (0) target = $region129
    $region128: #{_lambda_.1} parent=1 // pred_region
      %275 = dma.done [#allocation5], 2048
    $region129: #{_lambda_.1} parent=1 // pred_fallthru
      _
    // Predicated region
    $region130: #{_lambda_.1} parent=1 // pred_check
      _
    $region131: #{_lambda_.1} parent=1 // pred_check_branch
      %277 = sbr.rel (0) target = $region133
    $region132: #{_lambda_.1} parent=1 // pred_region
      %278 = dma.done [#allocation8], 2048
    $region133: #{_lambda_.1} parent=1 // pred_fallthru
      _
    // Predicated region
    $region134: #{_lambda_.1} parent=1 // pred_check
      _
    $region135: #{_lambda_.1} parent=1 // pred_check_branch
      %280 = sbr.rel (0) target = $region137
    $region136: #{_lambda_.1} parent=1 // pred_region
      %281 = dma.done [#allocation8], 2048
    $region137: #{_lambda_.1} parent=1 // pred_fallthru
      _
    // Predicated region
    $region138: #{_lambda_.1} parent=1 // pred_check
      _
    $region139: #{_lambda_.1} parent=1 // pred_check_branch
      %283 = sbr.rel (0) target = $region141
    $region140: #{_lambda_.1} parent=1 // pred_region
      %284 = dma.done [#allocation11], 2048
    $region141: #{_lambda_.1} parent=1 // pred_fallthru
      _
    // Predicated region
    $region142: #{_lambda_.1} parent=1 // pred_check
      _
    $region143: #{_lambda_.1} parent=1 // pred_check_branch
      %286 = sbr.rel (0) target = $region145
    $region144: #{_lambda_.1} parent=1 // pred_region
      %287 = dma.done [#allocation11], 2048
    $region145: #{_lambda_.1} parent=1 // pred_fallthru
      _
    // Predicated region
    $region146: #{_lambda_.1} parent=1 // pred_check
      _
    $region147: #{_lambda_.1} parent=1 // pred_check_branch
      %289 = sbr.rel (0) target = $region149
    $region148: #{_lambda_.1} parent=1 // pred_region
      %290 = dma.done [#allocation14], 2048
    $region149: #{_lambda_.1} parent=1 // pred_fallthru
      _
    // Predicated region
    $region150: #{_lambda_.1} parent=1 // pred_check
      _
    $region151: #{_lambda_.1} parent=1 // pred_check_branch
      %292 = sbr.rel (0) target = $region153
    $region152: #{_lambda_.1} parent=1 // pred_region
      %293 = dma.done [#allocation14], 2048
    $region153: #{_lambda_.1} parent=1 // pred_fallthru
      _
    // Predicated region
    $region154: #{_lambda_.1} parent=1 // pred_check
      _
    $region155: #{_lambda_.1} parent=1 // pred_check_branch
      %295 = sbr.rel (0) target = $region157
    $region156: #{_lambda_.1} parent=1 // pred_region
      %296 = dma.done [#allocation17], 2048
    $region157: #{_lambda_.1} parent=1 // pred_fallthru
      _
    // Predicated region
    $region158: #{_lambda_.1} parent=1 // pred_check
      _
    $region159: #{_lambda_.1} parent=1 // pred_check_branch
      %298 = sbr.rel (0) target = $region161
    $region160: #{_lambda_.1} parent=1 // pred_region
      %299 = dma.done [#allocation17], 2048
    $region161: #{_lambda_.1} parent=1 // pred_fallthru
      _
    %v300 = vld [vmem:[%s1] sm:$0xff]
    %v301 = vmul.f32 %v300, 0.5
    %v302 = vmul.f32 %v300, 0.044715
    %v303 = vmul.f32 %v302, %v300
    %v304 = vmul.f32 %v303, %v300
    %v305 = vadd.f32 %v300, %v304
    %v306 = vmul.f32 %v305, 0.7978846
    %v307 = vtanh.pop %v306
    %v308 = vadd.f32 %v307, 1.0
    %v309 = vmul.f32 %v301, %v308
    %v310 = vld [vmem:[#allocation2] sm:$0xff]
    %v311 = vld [vmem:[#allocation2 + $0x8] sm:$0xff]
    %v312 = vld [vmem:[#allocation2 + $0x10] sm:$0xff]
    %v313 = vld [vmem:[#allocation2 + $0x18] sm:$0xff]
    %v314 = vld [vmem:[#allocation2 + $0x20] sm:$0xff]
    %v315 = vld [vmem:[#allocation2 + $0x28] sm:$0xff]
    %v316 = vld [vmem:[#allocation2 + $0x30] sm:$0xff]
    %v317 = vld [vmem:[#allocation2 + $0x38] sm:$0xff]
    %v318 = vld [vmem:[#allocation2 + $0x40] sm:$0xff]
    %v319 = vld [vmem:[#allocation2 + $0x48] sm:$0xff]
    %v320 = vld [vmem:[#allocation2 + $0x50] sm:$0xff]
    %v321 = vld [vmem:[#allocation2 + $0x58] sm:$0xff]
    %v322 = vld [vmem:[#allocation2 + $0x60] sm:$0xff]
    %v323 = vld [vmem:[#allocation2 + $0x68] sm:$0xff]
    %v324 = vld [vmem:[#allocation2 + $0x70] sm:$0xff]
    %v325 = vld [vmem:[#allocation2 + $0x78] sm:$0xff]
    %v326 = vld [vmem:[%s13] sm:$0x1]
    %v328 = vlaneseq
    %v329 = vshrl.u32 %v328, 7
    %v330 = vsub.s32 0, %v329
    %v331 = vrot.slane %v326, %v330
    %333 = vmatprep.subr.mxu0 0.0
    %334 = vmatpush1.msra.mxu0 %v310
    %335 = vmatprep.subr.mxu0 0.0
    %336 = vmatpush1.msra.mxu0 %v311
    %337 = vmatprep.subr.mxu0 0.0
    %338 = vmatpush1.msra.mxu0 %v312
    %339 = vmatprep.subr.mxu0 0.0
    %340 = vmatpush1.msra.mxu0 %v313
    %341 = vmatprep.subr.mxu0 0.0
    %342 = vmatpush1.msra.mxu0 %v314
    %343 = vmatprep.subr.mxu0 0.0
    %344 = vmatpush1.msra.mxu0 %v315
    %345 = vmatprep.subr.mxu0 0.0
    %346 = vmatpush1.msra.mxu0 %v316
    %347 = vmatprep.subr.mxu0 0.0
    %348 = vmatpush1.msra.mxu0 %v317
    %349 = vmatprep.subr.mxu0 0.0
    %350 = vmatpush1.msra.mxu0 %v318
    %351 = vmatprep.subr.mxu0 0.0
    %352 = vmatpush1.msra.mxu0 %v319
    %353 = vmatprep.subr.mxu0 0.0
    %354 = vmatpush1.msra.mxu0 %v320
    %355 = vmatprep.subr.mxu0 0.0
    %356 = vmatpush1.msra.mxu0 %v321
    %357 = vmatprep.subr.mxu0 0.0
    %358 = vmatpush1.msra.mxu0 %v322
    %359 = vmatprep.subr.mxu0 0.0
    %360 = vmatpush1.msra.mxu0 %v323
    %361 = vmatprep.subr.mxu0 0.0
    %362 = vmatpush1.msra.mxu0 %v324
    %363 = vmatprep.subr.mxu0 0.0
    %364 = vmatpush1.msra.mxu0 %v325
    %365 = vmatprep.subr.mxu0 0.0
    %366 = vmatpush1.msra.mxu0 0.0
    %367 = vmatprep.subr.mxu0 0.0
    %368 = vmatpush1.msra.mxu0 0.0
    %369 = vmatprep.subr.mxu0 0.0
    %370 = vmatpush1.msra.mxu0 0.0
    %371 = vmatprep.subr.mxu0 0.0
    %372 = vmatpush1.msra.mxu0 0.0
    %373 = vmatprep.subr.mxu0 0.0
    %374 = vmatpush1.msra.mxu0 0.0
    %375 = vmatprep.subr.mxu0 0.0
    %376 = vmatpush1.msra.mxu0 0.0
    %377 = vmatprep.subr.mxu0 0.0
    %378 = vmatpush1.msra.mxu0 0.0
    %379 = vmatprep.subr.mxu0 0.0
    %380 = vmatpush1.msra.mxu0 0.0
    %381 = vmatprep.subr.mxu0 0.0
    %382 = vmatpush1.msra.mxu0 0.0
    %383 = vmatprep.subr.mxu0 0.0
    %384 = vmatpush1.msra.mxu0 0.0
    %385 = vmatprep.subr.mxu0 0.0
    %386 = vmatpush1.msra.mxu0 0.0
    %387 = vmatprep.subr.mxu0 0.0
    %388 = vmatpush1.msra.mxu0 0.0
    %389 = vmatprep.subr.mxu0 0.0
    %390 = vmatpush1.msra.mxu0 0.0
    %391 = vmatprep.subr.mxu0 0.0
    %392 = vmatpush1.msra.mxu0 0.0
    %393 = vmatprep.subr.mxu0 0.0
    %394 = vmatpush1.msra.mxu0 0.0
    %395 = vmatprep.subr.mxu0 0.0
    %396 = vmatpush1.msra.mxu0 0.0
    %397 = vmatprep.mubr.f32.mxu0 0.0
    %398 = vmatmul.mubr.f32.gmra.mrb[0].mxu0 %v309
    %v399 = vpop.f32.mrb[0].mxu0
    %v400 = vadd.f32 %v331, %v399
    %v401 = vpop.f32.mrb[0].mxu0
    %402 = vdwg.mxu0
    %v403 = vmul.f32 %v400, 0.5
    %v404 = vmul.f32 %v400, 0.044715
    %v405 = vmul.f32 %v404, %v400
    %v406 = vmul.f32 %v405, %v400
    %v407 = vadd.f32 %v400, %v406
    %v408 = vmul.f32 %v407, 0.7978846
    %v409 = vtanh.pop %v408
    %v410 = vadd.f32 %v409, 1.0
    %v411 = vmul.f32 %v403, %v410
    %v412 = vld [vmem:[#allocation4] sm:$0xff]
    %v413 = vld [vmem:[#allocation4 + $0x8] sm:$0xff]
    %v414 = vld [vmem:[#allocation4 + $0x10] sm:$0xff]
    %v415 = vld [vmem:[#allocation4 + $0x18] sm:$0xff]
    %v416 = vld [vmem:[#allocation4 + $0x20] sm:$0xff]
    %v417 = vld [vmem:[#allocation4 + $0x28] sm:$0xff]
    %v418 = vld [vmem:[#allocation4 + $0x30] sm:$0xff]
    %v419 = vld [vmem:[#allocation4 + $0x38] sm:$0xff]
    %v420 = vld [vmem:[#allocation4 + $0x40] sm:$0xff]
    %v421 = vld [vmem:[#allocation4 + $0x48] sm:$0xff]
    %v422 = vld [vmem:[#allocation4 + $0x50] sm:$0xff]
    %v423 = vld [vmem:[#allocation4 + $0x58] sm:$0xff]
    %v424 = vld [vmem:[#allocation4 + $0x60] sm:$0xff]
    %v425 = vld [vmem:[#allocation4 + $0x68] sm:$0xff]
    %v426 = vld [vmem:[#allocation4 + $0x70] sm:$0xff]
    %v427 = vld [vmem:[#allocation4 + $0x78] sm:$0xff]
    %v428 = vld [vmem:[%s17] sm:$0x1]
    %v430 = vlaneseq
    %v431 = vshrl.u32 %v430, 7
    %v432 = vsub.s32 0, %v431
    %v433 = vrot.slane %v428, %v432
    %435 = vmatprep.subr.mxu0 0.0
    %436 = vmatpush1.msra.mxu0 %v412
    %437 = vmatprep.subr.mxu0 0.0
    %438 = vmatpush1.msra.mxu0 %v413
    %439 = vmatprep.subr.mxu0 0.0
    %440 = vmatpush1.msra.mxu0 %v414
    %441 = vmatprep.subr.mxu0 0.0
    %442 = vmatpush1.msra.mxu0 %v415
    %443 = vmatprep.subr.mxu0 0.0
    %444 = vmatpush1.msra.mxu0 %v416
    %445 = vmatprep.subr.mxu0 0.0
    %446 = vmatpush1.msra.mxu0 %v417
    %447 = vmatprep.subr.mxu0 0.0
    %448 = vmatpush1.msra.mxu0 %v418
    %449 = vmatprep.subr.mxu0 0.0
    %450 = vmatpush1.msra.mxu0 %v419
    %451 = vmatprep.subr.mxu0 0.0
    %452 = vmatpush1.msra.mxu0 %v420
    %453 = vmatprep.subr.mxu0 0.0
    %454 = vmatpush1.msra.mxu0 %v421
    %455 = vmatprep.subr.mxu0 0.0
    %456 = vmatpush1.msra.mxu0 %v422
    %457 = vmatprep.subr.mxu0 0.0
    %458 = vmatpush1.msra.mxu0 %v423
    %459 = vmatprep.subr.mxu0 0.0
    %460 = vmatpush1.msra.mxu0 %v424
    %461 = vmatprep.subr.mxu0 0.0
    %462 = vmatpush1.msra.mxu0 %v425
    %463 = vmatprep.subr.mxu0 0.0
    %464 = vmatpush1.msra.mxu0 %v426
    %465 = vmatprep.subr.mxu0 0.0
    %466 = vmatpush1.msra.mxu0 %v427
    %467 = vmatprep.subr.mxu0 0.0
    %468 = vmatpush1.msra.mxu0 0.0
    %469 = vmatprep.subr.mxu0 0.0
    %470 = vmatpush1.msra.mxu0 0.0
    %471 = vmatprep.subr.mxu0 0.0
    %472 = vmatpush1.msra.mxu0 0.0
    %473 = vmatprep.subr.mxu0 0.0
    %474 = vmatpush1.msra.mxu0 0.0
    %475 = vmatprep.subr.mxu0 0.0
    %476 = vmatpush1.msra.mxu0 0.0
    %477 = vmatprep.subr.mxu0 0.0
    %478 = vmatpush1.msra.mxu0 0.0
    %479 = vmatprep.subr.mxu0 0.0
    %480 = vmatpush1.msra.mxu0 0.0
    %481 = vmatprep.subr.mxu0 0.0
    %482 = vmatpush1.msra.mxu0 0.0
    %483 = vmatprep.subr.mxu0 0.0
    %484 = vmatpush1.msra.mxu0 0.0
    %485 = vmatprep.subr.mxu0 0.0
    %486 = vmatpush1.msra.mxu0 0.0
    %487 = vmatprep.subr.mxu0 0.0
    %488 = vmatpush1.msra.mxu0 0.0
    %489 = vmatprep.subr.mxu0 0.0
    %490 = vmatpush1.msra.mxu0 0.0
    %491 = vmatprep.subr.mxu0 0.0
    %492 = vmatpush1.msra.mxu0 0.0
    %493 = vmatprep.subr.mxu0 0.0
    %494 = vmatpush1.msra.mxu0 0.0
    %495 = vmatprep.subr.mxu0 0.0
    %496 = vmatpush1.msra.mxu0 0.0
    %497 = vmatprep.subr.mxu0 0.0
    %498 = vmatpush1.msra.mxu0 0.0
    %499 = vmatprep.mubr.f32.mxu0 0.0
    %500 = vmatmul.mubr.f32.gmra.mrb[0].mxu0 %v411
    %v501 = vpop.f32.mrb[0].mxu0
    %v502 = vadd.f32 %v433, %v501
    %v503 = vpop.f32.mrb[0].mxu0
    %504 = vdwg.mxu0
    %v505 = vld [vmem:[#allocation6] sm:$0xff]
    %v506 = vld [vmem:[#allocation6 + $0x8] sm:$0xff]
    %v507 = vld [vmem:[#allocation6 + $0x10] sm:$0xff]
    %v508 = vld [vmem:[#allocation6 + $0x18] sm:$0xff]
    %v509 = vld [vmem:[#allocation6 + $0x20] sm:$0xff]
    %v510 = vld [vmem:[#allocation6 + $0x28] sm:$0xff]
    %v511 = vld [vmem:[#allocation6 + $0x30] sm:$0xff]
    %v512 = vld [vmem:[#allocation6 + $0x38] sm:$0xff]
    %v513 = vld [vmem:[#allocation6 + $0x40] sm:$0xff]
    %v514 = vld [vmem:[#allocation6 + $0x48] sm:$0xff]
    %v515 = vld [vmem:[#allocation6 + $0x50] sm:$0xff]
    %v516 = vld [vmem:[#allocation6 + $0x58] sm:$0xff]
    %v517 = vld [vmem:[#allocation6 + $0x60] sm:$0xff]
    %v518 = vld [vmem:[#allocation6 + $0x68] sm:$0xff]
    %v519 = vld [vmem:[#allocation6 + $0x70] sm:$0xff]
    %v520 = vld [vmem:[#allocation6 + $0x78] sm:$0xff]
    %v521 = vld [vmem:[%s21] sm:$0x1]
    %v523 = vlaneseq
    %v524 = vshrl.u32 %v523, 7
    %v525 = vsub.s32 0, %v524
    %v526 = vrot.slane %v521, %v525
    %528 = vmatprep.subr.mxu0 0.0
    %529 = vmatpush1.msra.mxu0 %v505
    %530 = vmatprep.subr.mxu0 0.0
    %531 = vmatpush1.msra.mxu0 %v506
    %532 = vmatprep.subr.mxu0 0.0
    %533 = vmatpush1.msra.mxu0 %v507
    %534 = vmatprep.subr.mxu0 0.0
    %535 = vmatpush1.msra.mxu0 %v508
    %536 = vmatprep.subr.mxu0 0.0
    %537 = vmatpush1.msra.mxu0 %v509
    %538 = vmatprep.subr.mxu0 0.0
    %539 = vmatpush1.msra.mxu0 %v510
    %540 = vmatprep.subr.mxu0 0.0
    %541 = vmatpush1.msra.mxu0 %v511
    %542 = vmatprep.subr.mxu0 0.0
    %543 = vmatpush1.msra.mxu0 %v512
    %544 = vmatprep.subr.mxu0 0.0
    %545 = vmatpush1.msra.mxu0 %v513
    %546 = vmatprep.subr.mxu0 0.0
    %547 = vmatpush1.msra.mxu0 %v514
    %548 = vmatprep.subr.mxu0 0.0
    %549 = vmatpush1.msra.mxu0 %v515
    %550 = vmatprep.subr.mxu0 0.0
    %551 = vmatpush1.msra.mxu0 %v516
    %552 = vmatprep.subr.mxu0 0.0
    %553 = vmatpush1.msra.mxu0 %v517
    %554 = vmatprep.subr.mxu0 0.0
    %555 = vmatpush1.msra.mxu0 %v518
    %556 = vmatprep.subr.mxu0 0.0
    %557 = vmatpush1.msra.mxu0 %v519
    %558 = vmatprep.subr.mxu0 0.0
    %559 = vmatpush1.msra.mxu0 %v520
    %560 = vmatprep.subr.mxu0 0.0
    %561 = vmatpush1.msra.mxu0 0.0
    %562 = vmatprep.subr.mxu0 0.0
    %563 = vmatpush1.msra.mxu0 0.0
    %564 = vmatprep.subr.mxu0 0.0
    %565 = vmatpush1.msra.mxu0 0.0
    %566 = vmatprep.subr.mxu0 0.0
    %567 = vmatpush1.msra.mxu0 0.0
    %568 = vmatprep.subr.mxu0 0.0
    %569 = vmatpush1.msra.mxu0 0.0
    %570 = vmatprep.subr.mxu0 0.0
    %571 = vmatpush1.msra.mxu0 0.0
    %572 = vmatprep.subr.mxu0 0.0
    %573 = vmatpush1.msra.mxu0 0.0
    %574 = vmatprep.subr.mxu0 0.0
    %575 = vmatpush1.msra.mxu0 0.0
    %576 = vmatprep.subr.mxu0 0.0
    %577 = vmatpush1.msra.mxu0 0.0
    %578 = vmatprep.subr.mxu0 0.0
    %579 = vmatpush1.msra.mxu0 0.0
    %580 = vmatprep.subr.mxu0 0.0
    %581 = vmatpush1.msra.mxu0 0.0
    %582 = vmatprep.subr.mxu0 0.0
    %583 = vmatpush1.msra.mxu0 0.0
    %584 = vmatprep.subr.mxu0 0.0
    %585 = vmatpush1.msra.mxu0 0.0
    %586 = vmatprep.subr.mxu0 0.0
    %587 = vmatpush1.msra.mxu0 0.0
    %588 = vmatprep.subr.mxu0 0.0
    %589 = vmatpush1.msra.mxu0 0.0
    %590 = vmatprep.subr.mxu0 0.0
    %591 = vmatpush1.msra.mxu0 0.0
    %592 = vmatprep.mubr.f32.mxu0 0.0
    %593 = vmatmul.mubr.f32.gmra.mrb[0].mxu0 %v411
    %v594 = vpop.f32.mrb[0].mxu0
    %v595 = vadd.f32 %v526, %v594
    %v596 = vpop.f32.mrb[0].mxu0
    %597 = vdwg.mxu0
    %vm598 = vcmp.gt.f32.partialorder %v595, 0.0
    %v599 = vadd.f32 %v595, 1.0
    %v600 = vmul.f32 %v595, 1.442695
    %v601 = vpow.pop %v600
    %v602 = vsel %vm598, %v599, %v601
    %603 = vst [vmem:[%s59] sm:$0xff] %v502
    %604 = vst [vmem:[%s63] sm:$0xff] %v602
    %v605 = vld [vmem:[%s3] sm:$0xff]
    %v606 = vmul.f32 %v605, 0.5
    %v607 = vmul.f32 %v605, 0.044715
    %v608 = vmul.f32 %v607, %v605
    %v609 = vmul.f32 %v608, %v605
    %v610 = vadd.f32 %v605, %v609
    %v611 = vmul.f32 %v610, 0.7978846
    %v612 = vtanh.pop %v611
    %v613 = vadd.f32 %v612, 1.0
    %v614 = vmul.f32 %v606, %v613
    %v615 = vld [vmem:[#allocation7] sm:$0xff]
    %v616 = vld [vmem:[#allocation7 + $0x8] sm:$0xff]
    %v617 = vld [vmem:[#allocation7 + $0x10] sm:$0xff]
    %v618 = vld [vmem:[#allocation7 + $0x18] sm:$0xff]
    %v619 = vld [vmem:[#allocation7 + $0x20] sm:$0xff]
    %v620 = vld [vmem:[#allocation7 + $0x28] sm:$0xff]
    %v621 = vld [vmem:[#allocation7 + $0x30] sm:$0xff]
    %v622 = vld [vmem:[#allocation7 + $0x38] sm:$0xff]
    %v623 = vld [vmem:[#allocation7 + $0x40] sm:$0xff]
    %v624 = vld [vmem:[#allocation7 + $0x48] sm:$0xff]
    %v625 = vld [vmem:[#allocation7 + $0x50] sm:$0xff]
    %v626 = vld [vmem:[#allocation7 + $0x58] sm:$0xff]
    %v627 = vld [vmem:[#allocation7 + $0x60] sm:$0xff]
    %v628 = vld [vmem:[#allocation7 + $0x68] sm:$0xff]
    %v629 = vld [vmem:[#allocation7 + $0x70] sm:$0xff]
    %v630 = vld [vmem:[#allocation7 + $0x78] sm:$0xff]
    %v631 = vld [vmem:[%s25] sm:$0x1]
    %v633 = vlaneseq
    %v634 = vshrl.u32 %v633, 7
    %v635 = vsub.s32 0, %v634
    %v636 = vrot.slane %v631, %v635
    %638 = vmatprep.subr.mxu0 0.0
    %639 = vmatpush1.msra.mxu0 %v615
    %640 = vmatprep.subr.mxu0 0.0
    %641 = vmatpush1.msra.mxu0 %v616
    %642 = vmatprep.subr.mxu0 0.0
    %643 = vmatpush1.msra.mxu0 %v617
    %644 = vmatprep.subr.mxu0 0.0
    %645 = vmatpush1.msra.mxu0 %v618
    %646 = vmatprep.subr.mxu0 0.0
    %647 = vmatpush1.msra.mxu0 %v619
    %648 = vmatprep.subr.mxu0 0.0
    %649 = vmatpush1.msra.mxu0 %v620
    %650 = vmatprep.subr.mxu0 0.0
    %651 = vmatpush1.msra.mxu0 %v621
    %652 = vmatprep.subr.mxu0 0.0
    %653 = vmatpush1.msra.mxu0 %v622
    %654 = vmatprep.subr.mxu0 0.0
    %655 = vmatpush1.msra.mxu0 %v623
    %656 = vmatprep.subr.mxu0 0.0
    %657 = vmatpush1.msra.mxu0 %v624
    %658 = vmatprep.subr.mxu0 0.0
    %659 = vmatpush1.msra.mxu0 %v625
    %660 = vmatprep.subr.mxu0 0.0
    %661 = vmatpush1.msra.mxu0 %v626
    %662 = vmatprep.subr.mxu0 0.0
    %663 = vmatpush1.msra.mxu0 %v627
    %664 = vmatprep.subr.mxu0 0.0
    %665 = vmatpush1.msra.mxu0 %v628
    %666 = vmatprep.subr.mxu0 0.0
    %667 = vmatpush1.msra.mxu0 %v629
    %668 = vmatprep.subr.mxu0 0.0
    %669 = vmatpush1.msra.mxu0 %v630
    %670 = vmatprep.subr.mxu0 0.0
    %671 = vmatpush1.msra.mxu0 0.0
    %672 = vmatprep.subr.mxu0 0.0
    %673 = vmatpush1.msra.mxu0 0.0
    %674 = vmatprep.subr.mxu0 0.0
    %675 = vmatpush1.msra.mxu0 0.0
    %676 = vmatprep.subr.mxu0 0.0
    %677 = vmatpush1.msra.mxu0 0.0
    %678 = vmatprep.subr.mxu0 0.0
    %679 = vmatpush1.msra.mxu0 0.0
    %680 = vmatprep.subr.mxu0 0.0
    %681 = vmatpush1.msra.mxu0 0.0
    %682 = vmatprep.subr.mxu0 0.0
    %683 = vmatpush1.msra.mxu0 0.0
    %684 = vmatprep.subr.mxu0 0.0
    %685 = vmatpush1.msra.mxu0 0.0
    %686 = vmatprep.subr.mxu0 0.0
    %687 = vmatpush1.msra.mxu0 0.0
    %688 = vmatprep.subr.mxu0 0.0
    %689 = vmatpush1.msra.mxu0 0.0
    %690 = vmatprep.subr.mxu0 0.0
    %691 = vmatpush1.msra.mxu0 0.0
    %692 = vmatprep.subr.mxu0 0.0
    %693 = vmatpush1.msra.mxu0 0.0
    %694 = vmatprep.subr.mxu0 0.0
    %695 = vmatpush1.msra.mxu0 0.0
    %696 = vmatprep.subr.mxu0 0.0
    %697 = vmatpush1.msra.mxu0 0.0
    %698 = vmatprep.subr.mxu0 0.0
    %699 = vmatpush1.msra.mxu0 0.0
    %700 = vmatprep.subr.mxu0 0.0
    %701 = vmatpush1.msra.mxu0 0.0
    %702 = vmatprep.mubr.f32.mxu0 0.0
    %703 = vmatmul.mubr.f32.gmra.mrb[0].mxu0 %v614
    %v704 = vpop.f32.mrb[0].mxu0
    %v705 = vadd.f32 %v636, %v704
    %v706 = vpop.f32.mrb[0].mxu0
    %707 = vdwg.mxu0
    %v708 = vmul.f32 %v705, 0.5
    %v709 = vmul.f32 %v705, 0.044715
    %v710 = vmul.f32 %v709, %v705
    %v711 = vmul.f32 %v710, %v705
    %v712 = vadd.f32 %v705, %v711
    %v713 = vmul.f32 %v712, 0.7978846
    %v714 = vtanh.pop %v713
    %v715 = vadd.f32 %v714, 1.0
    %v716 = vmul.f32 %v708, %v715
    %v717 = vld [vmem:[#allocation9] sm:$0xff]
    %v718 = vld [vmem:[#allocation9 + $0x8] sm:$0xff]
    %v719 = vld [vmem:[#allocation9 + $0x10] sm:$0xff]
    %v720 = vld [vmem:[#allocation9 + $0x18] sm:$0xff]
    %v721 = vld [vmem:[#allocation9 + $0x20] sm:$0xff]
    %v722 = vld [vmem:[#allocation9 + $0x28] sm:$0xff]
    %v723 = vld [vmem:[#allocation9 + $0x30] sm:$0xff]
    %v724 = vld [vmem:[#allocation9 + $0x38] sm:$0xff]
    %v725 = vld [vmem:[#allocation9 + $0x40] sm:$0xff]
    %v726 = vld [vmem:[#allocation9 + $0x48] sm:$0xff]
    %v727 = vld [vmem:[#allocation9 + $0x50] sm:$0xff]
    %v728 = vld [vmem:[#allocation9 + $0x58] sm:$0xff]
    %v729 = vld [vmem:[#allocation9 + $0x60] sm:$0xff]
    %v730 = vld [vmem:[#allocation9 + $0x68] sm:$0xff]
    %v731 = vld [vmem:[#allocation9 + $0x70] sm:$0xff]
    %v732 = vld [vmem:[#allocation9 + $0x78] sm:$0xff]
    %v733 = vld [vmem:[%s29] sm:$0x1]
    %v735 = vlaneseq
    %v736 = vshrl.u32 %v735, 7
    %v737 = vsub.s32 0, %v736
    %v738 = vrot.slane %v733, %v737
    %740 = vmatprep.subr.mxu0 0.0
    %741 = vmatpush1.msra.mxu0 %v717
    %742 = vmatprep.subr.mxu0 0.0
    %743 = vmatpush1.msra.mxu0 %v718
    %744 = vmatprep.subr.mxu0 0.0
    %745 = vmatpush1.msra.mxu0 %v719
    %746 = vmatprep.subr.mxu0 0.0
    %747 = vmatpush1.msra.mxu0 %v720
    %748 = vmatprep.subr.mxu0 0.0
    %749 = vmatpush1.msra.mxu0 %v721
    %750 = vmatprep.subr.mxu0 0.0
    %751 = vmatpush1.msra.mxu0 %v722
    %752 = vmatprep.subr.mxu0 0.0
    %753 = vmatpush1.msra.mxu0 %v723
    %754 = vmatprep.subr.mxu0 0.0
    %755 = vmatpush1.msra.mxu0 %v724
    %756 = vmatprep.subr.mxu0 0.0
    %757 = vmatpush1.msra.mxu0 %v725
    %758 = vmatprep.subr.mxu0 0.0
    %759 = vmatpush1.msra.mxu0 %v726
    %760 = vmatprep.subr.mxu0 0.0
    %761 = vmatpush1.msra.mxu0 %v727
    %762 = vmatprep.subr.mxu0 0.0
    %763 = vmatpush1.msra.mxu0 %v728
    %764 = vmatprep.subr.mxu0 0.0
    %765 = vmatpush1.msra.mxu0 %v729
    %766 = vmatprep.subr.mxu0 0.0
    %767 = vmatpush1.msra.mxu0 %v730
    %768 = vmatprep.subr.mxu0 0.0
    %769 = vmatpush1.msra.mxu0 %v731
    %770 = vmatprep.subr.mxu0 0.0
    %771 = vmatpush1.msra.mxu0 %v732
    %772 = vmatprep.subr.mxu0 0.0
    %773 = vmatpush1.msra.mxu0 0.0
    %774 = vmatprep.subr.mxu0 0.0
    %775 = vmatpush1.msra.mxu0 0.0
    %776 = vmatprep.subr.mxu0 0.0
    %777 = vmatpush1.msra.mxu0 0.0
    %778 = vmatprep.subr.mxu0 0.0
    %779 = vmatpush1.msra.mxu0 0.0
    %780 = vmatprep.subr.mxu0 0.0
    %781 = vmatpush1.msra.mxu0 0.0
    %782 = vmatprep.subr.mxu0 0.0
    %783 = vmatpush1.msra.mxu0 0.0
    %784 = vmatprep.subr.mxu0 0.0
    %785 = vmatpush1.msra.mxu0 0.0
    %786 = vmatprep.subr.mxu0 0.0
    %787 = vmatpush1.msra.mxu0 0.0
    %788 = vmatprep.subr.mxu0 0.0
    %789 = vmatpush1.msra.mxu0 0.0
    %790 = vmatprep.subr.mxu0 0.0
    %791 = vmatpush1.msra.mxu0 0.0
    %792 = vmatprep.subr.mxu0 0.0
    %793 = vmatpush1.msra.mxu0 0.0
    %794 = vmatprep.subr.mxu0 0.0
    %795 = vmatpush1.msra.mxu0 0.0
    %796 = vmatprep.subr.mxu0 0.0
    %797 = vmatpush1.msra.mxu0 0.0
    %798 = vmatprep.subr.mxu0 0.0
    %799 = vmatpush1.msra.mxu0 0.0
    %800 = vmatprep.subr.mxu0 0.0
    %801 = vmatpush1.msra.mxu0 0.0
    %802 = vmatprep.subr.mxu0 0.0
    %803 = vmatpush1.msra.mxu0 0.0
    %804 = vmatprep.mubr.f32.mxu0 0.0
    %805 = vmatmul.mubr.f32.gmra.mrb[0].mxu0 %v716
    %v806 = vpop.f32.mrb[0].mxu0
    %v807 = vadd.f32 %v738, %v806
    %v808 = vpop.f32.mrb[0].mxu0
    %809 = vdwg.mxu0
    %v810 = vld [vmem:[#allocation10] sm:$0xff]
    %v811 = vld [vmem:[#allocation10 + $0x8] sm:$0xff]
    %v812 = vld [vmem:[#allocation10 + $0x10] sm:$0xff]
    %v813 = vld [vmem:[#allocation10 + $0x18] sm:$0xff]
    %v814 = vld [vmem:[#allocation10 + $0x20] sm:$0xff]
    %v815 = vld [vmem:[#allocation10 + $0x28] sm:$0xff]
    %v816 = vld [vmem:[#allocation10 + $0x30] sm:$0xff]
    %v817 = vld [vmem:[#allocation10 + $0x38] sm:$0xff]
    %v818 = vld [vmem:[#allocation10 + $0x40] sm:$0xff]
    %v819 = vld [vmem:[#allocation10 + $0x48] sm:$0xff]
    %v820 = vld [vmem:[#allocation10 + $0x50] sm:$0xff]
    %v821 = vld [vmem:[#allocation10 + $0x58] sm:$0xff]
    %v822 = vld [vmem:[#allocation10 + $0x60] sm:$0xff]
    %v823 = vld [vmem:[#allocation10 + $0x68] sm:$0xff]
    %v824 = vld [vmem:[#allocation10 + $0x70] sm:$0xff]
    %v825 = vld [vmem:[#allocation10 + $0x78] sm:$0xff]
    %v826 = vld [vmem:[%s33] sm:$0x1]
    %v828 = vlaneseq
    %v829 = vshrl.u32 %v828, 7
    %v830 = vsub.s32 0, %v829
    %v831 = vrot.slane %v826, %v830
    %833 = vmatprep.subr.mxu0 0.0
    %834 = vmatpush1.msra.mxu0 %v810
    %835 = vmatprep.subr.mxu0 0.0
    %836 = vmatpush1.msra.mxu0 %v811
    %837 = vmatprep.subr.mxu0 0.0
    %838 = vmatpush1.msra.mxu0 %v812
    %839 = vmatprep.subr.mxu0 0.0
    %840 = vmatpush1.msra.mxu0 %v813
    %841 = vmatprep.subr.mxu0 0.0
    %842 = vmatpush1.msra.mxu0 %v814
    %843 = vmatprep.subr.mxu0 0.0
    %844 = vmatpush1.msra.mxu0 %v815
    %845 = vmatprep.subr.mxu0 0.0
    %846 = vmatpush1.msra.mxu0 %v816
    %847 = vmatprep.subr.mxu0 0.0
    %848 = vmatpush1.msra.mxu0 %v817
    %849 = vmatprep.subr.mxu0 0.0
    %850 = vmatpush1.msra.mxu0 %v818
    %851 = vmatprep.subr.mxu0 0.0
    %852 = vmatpush1.msra.mxu0 %v819
    %853 = vmatprep.subr.mxu0 0.0
    %854 = vmatpush1.msra.mxu0 %v820
    %855 = vmatprep.subr.mxu0 0.0
    %856 = vmatpush1.msra.mxu0 %v821
    %857 = vmatprep.subr.mxu0 0.0
    %858 = vmatpush1.msra.mxu0 %v822
    %859 = vmatprep.subr.mxu0 0.0
    %860 = vmatpush1.msra.mxu0 %v823
    %861 = vmatprep.subr.mxu0 0.0
    %862 = vmatpush1.msra.mxu0 %v824
    %863 = vmatprep.subr.mxu0 0.0
    %864 = vmatpush1.msra.mxu0 %v825
    %865 = vmatprep.subr.mxu0 0.0
    %866 = vmatpush1.msra.mxu0 0.0
    %867 = vmatprep.subr.mxu0 0.0
    %868 = vmatpush1.msra.mxu0 0.0
    %869 = vmatprep.subr.mxu0 0.0
    %870 = vmatpush1.msra.mxu0 0.0
    %871 = vmatprep.subr.mxu0 0.0
    %872 = vmatpush1.msra.mxu0 0.0
    %873 = vmatprep.subr.mxu0 0.0
    %874 = vmatpush1.msra.mxu0 0.0
    %875 = vmatprep.subr.mxu0 0.0
    %876 = vmatpush1.msra.mxu0 0.0
    %877 = vmatprep.subr.mxu0 0.0
    %878 = vmatpush1.msra.mxu0 0.0
    %879 = vmatprep.subr.mxu0 0.0
    %880 = vmatpush1.msra.mxu0 0.0
    %881 = vmatprep.subr.mxu0 0.0
    %882 = vmatpush1.msra.mxu0 0.0
    %883 = vmatprep.subr.mxu0 0.0
    %884 = vmatpush1.msra.mxu0 0.0
    %885 = vmatprep.subr.mxu0 0.0
    %886 = vmatpush1.msra.mxu0 0.0
    %887 = vmatprep.subr.mxu0 0.0
    %888 = vmatpush1.msra.mxu0 0.0
    %889 = vmatprep.subr.mxu0 0.0
    %890 = vmatpush1.msra.mxu0 0.0
    %891 = vmatprep.subr.mxu0 0.0
    %892 = vmatpush1.msra.mxu0 0.0
    %893 = vmatprep.subr.mxu0 0.0
    %894 = vmatpush1.msra.mxu0 0.0
    %895 = vmatprep.subr.mxu0 0.0
    %896 = vmatpush1.msra.mxu0 0.0
    %897 = vmatprep.mubr.f32.mxu0 0.0
    %898 = vmatmul.mubr.f32.gmra.mrb[0].mxu0 %v716
    %v899 = vpop.f32.mrb[0].mxu0
    %v900 = vadd.f32 %v831, %v899
    %v901 = vpop.f32.mrb[0].mxu0
    %902 = vdwg.mxu0
    %vm903 = vcmp.gt.f32.partialorder %v900, 0.0
    %v904 = vadd.f32 %v900, 1.0
    %v905 = vmul.f32 %v900, 1.442695
    %v906 = vpow.pop %v905
    %v907 = vsel %vm903, %v904, %v906
    %908 = vst [vmem:[%s61] sm:$0xff] %v807
    %909 = vst [vmem:[%s65] sm:$0xff] %v907
    %910 = vst [vmem:[%s77] sm:$0xff] %v807
    %911 = vst [vmem:[%s81] sm:$0xff] %v907
    %v912 = vld [vmem:[%s7] sm:$0xff]
    %v913 = vmul.f32 %v907, %v912
    %v914 = vadd.f32 %v807, %v913
    %915 = vst [vmem:[%s85] sm:$0xff] %v914
    %v916 = vmul.f32 %v914, 0.5
    %v917 = vmul.f32 %v914, 0.044715
    %v918 = vmul.f32 %v917, %v914
    %v919 = vmul.f32 %v918, %v914
    %v920 = vadd.f32 %v914, %v919
    %v921 = vmul.f32 %v920, 0.7978846
    %v922 = vtanh.pop %v921
    %v923 = vadd.f32 %v922, 1.0
    %v924 = vmul.f32 %v916, %v923
    %v925 = vld [vmem:[#allocation16] sm:$0xff]
    %v926 = vld [vmem:[#allocation16 + $0x8] sm:$0xff]
    %v927 = vld [vmem:[#allocation16 + $0x10] sm:$0xff]
    %v928 = vld [vmem:[#allocation16 + $0x18] sm:$0xff]
    %v929 = vld [vmem:[#allocation16 + $0x20] sm:$0xff]
    %v930 = vld [vmem:[#allocation16 + $0x28] sm:$0xff]
    %v931 = vld [vmem:[#allocation16 + $0x30] sm:$0xff]
    %v932 = vld [vmem:[#allocation16 + $0x38] sm:$0xff]
    %v933 = vld [vmem:[#allocation16 + $0x40] sm:$0xff]
    %v934 = vld [vmem:[#allocation16 + $0x48] sm:$0xff]
    %v935 = vld [vmem:[#allocation16 + $0x50] sm:$0xff]
    %v936 = vld [vmem:[#allocation16 + $0x58] sm:$0xff]
    %v937 = vld [vmem:[#allocation16 + $0x60] sm:$0xff]
    %v938 = vld [vmem:[#allocation16 + $0x68] sm:$0xff]
    %v939 = vld [vmem:[#allocation16 + $0x70] sm:$0xff]
    %v940 = vld [vmem:[#allocation16 + $0x78] sm:$0xff]
    %v941 = vld [vmem:[%s49] sm:$0x1]
    %v943 = vlaneseq
    %v944 = vshrl.u32 %v943, 7
    %v945 = vsub.s32 0, %v944
    %v946 = vrot.slane %v941, %v945
    %948 = vmatprep.subr.mxu0 0.0
    %949 = vmatpush1.msra.mxu0 %v925
    %950 = vmatprep.subr.mxu0 0.0
    %951 = vmatpush1.msra.mxu0 %v926
    %952 = vmatprep.subr.mxu0 0.0
    %953 = vmatpush1.msra.mxu0 %v927
    %954 = vmatprep.subr.mxu0 0.0
    %955 = vmatpush1.msra.mxu0 %v928
    %956 = vmatprep.subr.mxu0 0.0
    %957 = vmatpush1.msra.mxu0 %v929
    %958 = vmatprep.subr.mxu0 0.0
    %959 = vmatpush1.msra.mxu0 %v930
    %960 = vmatprep.subr.mxu0 0.0
    %961 = vmatpush1.msra.mxu0 %v931
    %962 = vmatprep.subr.mxu0 0.0
    %963 = vmatpush1.msra.mxu0 %v932
    %964 = vmatprep.subr.mxu0 0.0
    %965 = vmatpush1.msra.mxu0 %v933
    %966 = vmatprep.subr.mxu0 0.0
    %967 = vmatpush1.msra.mxu0 %v934
    %968 = vmatprep.subr.mxu0 0.0
    %969 = vmatpush1.msra.mxu0 %v935
    %970 = vmatprep.subr.mxu0 0.0
    %971 = vmatpush1.msra.mxu0 %v936
    %972 = vmatprep.subr.mxu0 0.0
    %973 = vmatpush1.msra.mxu0 %v937
    %974 = vmatprep.subr.mxu0 0.0
    %975 = vmatpush1.msra.mxu0 %v938
    %976 = vmatprep.subr.mxu0 0.0
    %977 = vmatpush1.msra.mxu0 %v939
    %978 = vmatprep.subr.mxu0 0.0
    %979 = vmatpush1.msra.mxu0 %v940
    %980 = vmatprep.subr.mxu0 0.0
    %981 = vmatpush1.msra.mxu0 0.0
    %982 = vmatprep.subr.mxu0 0.0
    %983 = vmatpush1.msra.mxu0 0.0
    %984 = vmatprep.subr.mxu0 0.0
    %985 = vmatpush1.msra.mxu0 0.0
    %986 = vmatprep.subr.mxu0 0.0
    %987 = vmatpush1.msra.mxu0 0.0
    %988 = vmatprep.subr.mxu0 0.0
    %989 = vmatpush1.msra.mxu0 0.0
    %990 = vmatprep.subr.mxu0 0.0
    %991 = vmatpush1.msra.mxu0 0.0
    %992 = vmatprep.subr.mxu0 0.0
    %993 = vmatpush1.msra.mxu0 0.0
    %994 = vmatprep.subr.mxu0 0.0
    %995 = vmatpush1.msra.mxu0 0.0
    %996 = vmatprep.subr.mxu0 0.0
    %997 = vmatpush1.msra.mxu0 0.0
    %998 = vmatprep.subr.mxu0 0.0
    %999 = vmatpush1.msra.mxu0 0.0
    %1000 = vmatprep.subr.mxu0 0.0
    %1001 = vmatpush1.msra.mxu0 0.0
    %1002 = vmatprep.subr.mxu0 0.0
    %1003 = vmatpush1.msra.mxu0 0.0
    %1004 = vmatprep.subr.mxu0 0.0
    %1005 = vmatpush1.msra.mxu0 0.0
    %1006 = vmatprep.subr.mxu0 0.0
    %1007 = vmatpush1.msra.mxu0 0.0
    %1008 = vmatprep.subr.mxu0 0.0
    %1009 = vmatpush1.msra.mxu0 0.0
    %1010 = vmatprep.subr.mxu0 0.0
    %1011 = vmatpush1.msra.mxu0 0.0
    %1012 = vmatprep.mubr.f32.mxu0 0.0
    %1013 = vmatmul.mubr.f32.gmra.mrb[0].mxu0 %v924
    %v1014 = vpop.f32.mrb[0].mxu0
    %v1015 = vadd.f32 %v946, %v1014
    %v1016 = vpop.f32.mrb[0].mxu0
    %1017 = vdwg.mxu0
    %v1018 = vmul.f32 %v1015, 0.5
    %v1019 = vmul.f32 %v1015, 0.044715
    %v1020 = vmul.f32 %v1019, %v1015
    %v1021 = vmul.f32 %v1020, %v1015
    %v1022 = vadd.f32 %v1015, %v1021
    %v1023 = vmul.f32 %v1022, 0.7978846
    %v1024 = vtanh.pop %v1023
    %v1025 = vadd.f32 %v1024, 1.0
    %v1026 = vmul.f32 %v1018, %v1025
    %v1027 = vld [vmem:[#allocation18] sm:$0xff]
    %v1028 = vld [vmem:[#allocation18 + $0x8] sm:$0xff]
    %v1029 = vld [vmem:[#allocation18 + $0x10] sm:$0xff]
    %v1030 = vld [vmem:[#allocation18 + $0x18] sm:$0xff]
    %v1031 = vld [vmem:[#allocation18 + $0x20] sm:$0xff]
    %v1032 = vld [vmem:[#allocation18 + $0x28] sm:$0xff]
    %v1033 = vld [vmem:[#allocation18 + $0x30] sm:$0xff]
    %v1034 = vld [vmem:[#allocation18 + $0x38] sm:$0xff]
    %v1035 = vld [vmem:[#allocation18 + $0x40] sm:$0xff]
    %v1036 = vld [vmem:[#allocation18 + $0x48] sm:$0xff]
    %v1037 = vld [vmem:[#allocation18 + $0x50] sm:$0xff]
    %v1038 = vld [vmem:[#allocation18 + $0x58] sm:$0xff]
    %v1039 = vld [vmem:[#allocation18 + $0x60] sm:$0xff]
    %v1040 = vld [vmem:[#allocation18 + $0x68] sm:$0xff]
    %v1041 = vld [vmem:[#allocation18 + $0x70] sm:$0xff]
    %v1042 = vld [vmem:[#allocation18 + $0x78] sm:$0xff]
    %v1043 = vld [vmem:[%s53] sm:$0x1]
    %v1045 = vlaneseq
    %v1046 = vshrl.u32 %v1045, 7
    %v1047 = vsub.s32 0, %v1046
    %v1048 = vrot.slane %v1043, %v1047
    %1050 = vmatprep.subr.mxu0 0.0
    %1051 = vmatpush1.msra.mxu0 %v1027
    %1052 = vmatprep.subr.mxu0 0.0
    %1053 = vmatpush1.msra.mxu0 %v1028
    %1054 = vmatprep.subr.mxu0 0.0
    %1055 = vmatpush1.msra.mxu0 %v1029
    %1056 = vmatprep.subr.mxu0 0.0
    %1057 = vmatpush1.msra.mxu0 %v1030
    %1058 = vmatprep.subr.mxu0 0.0
    %1059 = vmatpush1.msra.mxu0 %v1031
    %1060 = vmatprep.subr.mxu0 0.0
    %1061 = vmatpush1.msra.mxu0 %v1032
    %1062 = vmatprep.subr.mxu0 0.0
    %1063 = vmatpush1.msra.mxu0 %v1033
    %1064 = vmatprep.subr.mxu0 0.0
    %1065 = vmatpush1.msra.mxu0 %v1034
    %1066 = vmatprep.subr.mxu0 0.0
    %1067 = vmatpush1.msra.mxu0 %v1035
    %1068 = vmatprep.subr.mxu0 0.0
    %1069 = vmatpush1.msra.mxu0 %v1036
    %1070 = vmatprep.subr.mxu0 0.0
    %1071 = vmatpush1.msra.mxu0 %v1037
    %1072 = vmatprep.subr.mxu0 0.0
    %1073 = vmatpush1.msra.mxu0 %v1038
    %1074 = vmatprep.subr.mxu0 0.0
    %1075 = vmatpush1.msra.mxu0 %v1039
    %1076 = vmatprep.subr.mxu0 0.0
    %1077 = vmatpush1.msra.mxu0 %v1040
    %1078 = vmatprep.subr.mxu0 0.0
    %1079 = vmatpush1.msra.mxu0 %v1041
    %1080 = vmatprep.subr.mxu0 0.0
    %1081 = vmatpush1.msra.mxu0 %v1042
    %1082 = vmatprep.subr.mxu0 0.0
    %1083 = vmatpush1.msra.mxu0 0.0
    %1084 = vmatprep.subr.mxu0 0.0
    %1085 = vmatpush1.msra.mxu0 0.0
    %1086 = vmatprep.subr.mxu0 0.0
    %1087 = vmatpush1.msra.mxu0 0.0
    %1088 = vmatprep.subr.mxu0 0.0
    %1089 = vmatpush1.msra.mxu0 0.0
    %1090 = vmatprep.subr.mxu0 0.0
    %1091 = vmatpush1.msra.mxu0 0.0
    %1092 = vmatprep.subr.mxu0 0.0
    %1093 = vmatpush1.msra.mxu0 0.0
    %1094 = vmatprep.subr.mxu0 0.0
    %1095 = vmatpush1.msra.mxu0 0.0
    %1096 = vmatprep.subr.mxu0 0.0
    %1097 = vmatpush1.msra.mxu0 0.0
    %1098 = vmatprep.subr.mxu0 0.0
    %1099 = vmatpush1.msra.mxu0 0.0
    %1100 = vmatprep.subr.mxu0 0.0
    %1101 = vmatpush1.msra.mxu0 0.0
    %1102 = vmatprep.subr.mxu0 0.0
    %1103 = vmatpush1.msra.mxu0 0.0
    %1104 = vmatprep.subr.mxu0 0.0
    %1105 = vmatpush1.msra.mxu0 0.0
    %1106 = vmatprep.subr.mxu0 0.0
    %1107 = vmatpush1.msra.mxu0 0.0
    %1108 = vmatprep.subr.mxu0 0.0
    %1109 = vmatpush1.msra.mxu0 0.0
    %1110 = vmatprep.subr.mxu0 0.0
    %1111 = vmatpush1.msra.mxu0 0.0
    %1112 = vmatprep.subr.mxu0 0.0
    %1113 = vmatpush1.msra.mxu0 0.0
    %1114 = vmatprep.mubr.f32.mxu0 0.0
    %1115 = vmatmul.mubr.f32.gmra.mrb[0].mxu0 %v1026
    %v1116 = vpop.f32.mrb[0].mxu0
    %v1117 = vadd.f32 %v1048, %v1116
    %v1118 = vpop.f32.mrb[0].mxu0
    %1119 = vdwg.mxu0
    %v1120 = vld [vmem:[%s55] sm:$0xff]
    %v1121 = vld [vmem:[%s55 + $0x8] sm:$0xff]
    %v1122 = vld [vmem:[%s55 + $0x10] sm:$0xff]
    %v1123 = vld [vmem:[%s55 + $0x18] sm:$0xff]
    %v1124 = vld [vmem:[%s55 + $0x20] sm:$0xff]
    %v1125 = vld [vmem:[%s55 + $0x28] sm:$0xff]
    %v1126 = vld [vmem:[%s55 + $0x30] sm:$0xff]
    %v1127 = vld [vmem:[%s55 + $0x38] sm:$0xff]
    %v1128 = vld [vmem:[%s55 + $0x40] sm:$0xff]
    %v1129 = vld [vmem:[%s55 + $0x48] sm:$0xff]
    %v1130 = vld [vmem:[%s55 + $0x50] sm:$0xff]
    %v1131 = vld [vmem:[%s55 + $0x58] sm:$0xff]
    %v1132 = vld [vmem:[%s55 + $0x60] sm:$0xff]
    %v1133 = vld [vmem:[%s55 + $0x68] sm:$0xff]
    %v1134 = vld [vmem:[%s55 + $0x70] sm:$0xff]
    %v1135 = vld [vmem:[%s55 + $0x78] sm:$0xff]
    %v1136 = vld [vmem:[%s57] sm:$0x1]
    %v1138 = vlaneseq
    %v1139 = vshrl.u32 %v1138, 7
    %v1140 = vsub.s32 0, %v1139
    %v1141 = vrot.slane %v1136, %v1140
    %1143 = vmatprep.subr.mxu0 0.0
    %1144 = vmatpush1.msra.mxu0 %v1120
    %1145 = vmatprep.subr.mxu0 0.0
    %1146 = vmatpush1.msra.mxu0 %v1121
    %1147 = vmatprep.subr.mxu0 0.0
    %1148 = vmatpush1.msra.mxu0 %v1122
    %1149 = vmatprep.subr.mxu0 0.0
    %1150 = vmatpush1.msra.mxu0 %v1123
    %1151 = vmatprep.subr.mxu0 0.0
    %1152 = vmatpush1.msra.mxu0 %v1124
    %1153 = vmatprep.subr.mxu0 0.0
    %1154 = vmatpush1.msra.mxu0 %v1125
    %1155 = vmatprep.subr.mxu0 0.0
    %1156 = vmatpush1.msra.mxu0 %v1126
    %1157 = vmatprep.subr.mxu0 0.0
    %1158 = vmatpush1.msra.mxu0 %v1127
    %1159 = vmatprep.subr.mxu0 0.0
    %1160 = vmatpush1.msra.mxu0 %v1128
    %1161 = vmatprep.subr.mxu0 0.0
    %1162 = vmatpush1.msra.mxu0 %v1129
    %1163 = vmatprep.subr.mxu0 0.0
    %1164 = vmatpush1.msra.mxu0 %v1130
    %1165 = vmatprep.subr.mxu0 0.0
    %1166 = vmatpush1.msra.mxu0 %v1131
    %1167 = vmatprep.subr.mxu0 0.0
    %1168 = vmatpush1.msra.mxu0 %v1132
    %1169 = vmatprep.subr.mxu0 0.0
    %1170 = vmatpush1.msra.mxu0 %v1133
    %1171 = vmatprep.subr.mxu0 0.0
    %1172 = vmatpush1.msra.mxu0 %v1134
    %1173 = vmatprep.subr.mxu0 0.0
    %1174 = vmatpush1.msra.mxu0 %v1135
    %1175 = vmatprep.subr.mxu0 0.0
    %1176 = vmatpush1.msra.mxu0 0.0
    %1177 = vmatprep.subr.mxu0 0.0
    %1178 = vmatpush1.msra.mxu0 0.0
    %1179 = vmatprep.subr.mxu0 0.0
    %1180 = vmatpush1.msra.mxu0 0.0
    %1181 = vmatprep.subr.mxu0 0.0
    %1182 = vmatpush1.msra.mxu0 0.0
    %1183 = vmatprep.subr.mxu0 0.0
    %1184 = vmatpush1.msra.mxu0 0.0
    %1185 = vmatprep.subr.mxu0 0.0
    %1186 = vmatpush1.msra.mxu0 0.0
    %1187 = vmatprep.subr.mxu0 0.0
    %1188 = vmatpush1.msra.mxu0 0.0
    %1189 = vmatprep.subr.mxu0 0.0
    %1190 = vmatpush1.msra.mxu0 0.0
    %1191 = vmatprep.subr.mxu0 0.0
    %1192 = vmatpush1.msra.mxu0 0.0
    %1193 = vmatprep.subr.mxu0 0.0
    %1194 = vmatpush1.msra.mxu0 0.0
    %1195 = vmatprep.subr.mxu0 0.0
    %1196 = vmatpush1.msra.mxu0 0.0
    %1197 = vmatprep.subr.mxu0 0.0
    %1198 = vmatpush1.msra.mxu0 0.0
    %1199 = vmatprep.subr.mxu0 0.0
    %1200 = vmatpush1.msra.mxu0 0.0
    %1201 = vmatprep.subr.mxu0 0.0
    %1202 = vmatpush1.msra.mxu0 0.0
    %1203 = vmatprep.subr.mxu0 0.0
    %1204 = vmatpush1.msra.mxu0 0.0
    %1205 = vmatprep.subr.mxu0 0.0
    %1206 = vmatpush1.msra.mxu0 0.0
    %1207 = vmatprep.mubr.f32.mxu0 0.0
    %1208 = vmatmul.mubr.f32.gmra.mrb[0].mxu0 %v1026
    %v1209 = vpop.f32.mrb[0].mxu0
    %v1210 = vadd.f32 %v1141, %v1209
    %v1211 = vpop.f32.mrb[0].mxu0
    %1212 = vdwg.mxu0
    %v1213 = vsub.f32 0.0, %v1210
    %v1214 = vmul.f32 %v1213, 1.442695
    %v1215 = vpow.pop %v1214
    %v1216 = vadd.f32 %v1215, 1.0
    %v1217 = vrcp.pop %v1216
    %v1218 = vmul.f32 %v1217, 0.999
    %v1219 = vadd.f32 %v1218, 0.001
    %1220 = vst [vmem:[%s69] sm:$0xff] %v1117
    %1221 = vst [vmem:[%s73] sm:$0xff] %v1219
    %v1222 = vmul.f32 %v602, %v602
    %v1223 = vrcp.pop %v1222
    %v1224 = vmul.f32 %v1219, %v1219
    %v1225 = vrcp.pop %v1224
    %v1226 = vadd.f32 %v1223, %v1225
    %v1227 = vrcp.pop %v1226
    %v1228 = vmul.f32 %v502, %v1223
    %v1229 = vmul.f32 %v1117, %v1225
    %v1230 = vadd.f32 %v1228, %v1229
    %v1231 = vmul.f32 %v1227, %v1230
    %v1232 = vrsqrt.pop %v1227
    %v1233 = vmul.f32 %v1227, %v1232
    %vm1234 = vcmp.eq.f32.partialorder %v1227, inf
    %v1235 = vsel %vm1234, %v1227, %v1233
    %vm1236 = vcmp.eq.f32.partialorder %v1227, 0.0
    %v1237 = vand.u32 %v1227, 2147483648
    %v1238 = vsel %vm1236, %v1237, %v1235
    %1239 = vst [vmem:[%s75] sm:$0xff] %v1231
    %1240 = vst [vmem:[%s79] sm:$0xff] %v1238
    %v1241 = vld [vmem:[%s5] sm:$0xff]
    %v1242 = vmul.f32 %v1238, %v1241
    %v1243 = vadd.f32 %v1231, %v1242
    %1244 = vst [vmem:[%s83] sm:$0xff] %v1243
    %v1245 = vmul.f32 %v1243, 0.5
    %v1246 = vmul.f32 %v1243, 0.044715
    %v1247 = vmul.f32 %v1246, %v1243
    %v1248 = vmul.f32 %v1247, %v1243
    %v1249 = vadd.f32 %v1243, %v1248
    %v1250 = vmul.f32 %v1249, 0.7978846
    %v1251 = vtanh.pop %v1250
    %v1252 = vadd.f32 %v1251, 1.0
    %v1253 = vmul.f32 %v1245, %v1252
    %v1254 = vld [vmem:[#allocation12] sm:$0xff]
    %v1255 = vld [vmem:[#allocation12 + $0x8] sm:$0xff]
    %v1256 = vld [vmem:[#allocation12 + $0x10] sm:$0xff]
    %v1257 = vld [vmem:[#allocation12 + $0x18] sm:$0xff]
    %v1258 = vld [vmem:[#allocation12 + $0x20] sm:$0xff]
    %v1259 = vld [vmem:[#allocation12 + $0x28] sm:$0xff]
    %v1260 = vld [vmem:[#allocation12 + $0x30] sm:$0xff]
    %v1261 = vld [vmem:[#allocation12 + $0x38] sm:$0xff]
    %v1262 = vld [vmem:[#allocation12 + $0x40] sm:$0xff]
    %v1263 = vld [vmem:[#allocation12 + $0x48] sm:$0xff]
    %v1264 = vld [vmem:[#allocation12 + $0x50] sm:$0xff]
    %v1265 = vld [vmem:[#allocation12 + $0x58] sm:$0xff]
    %v1266 = vld [vmem:[#allocation12 + $0x60] sm:$0xff]
    %v1267 = vld [vmem:[#allocation12 + $0x68] sm:$0xff]
    %v1268 = vld [vmem:[#allocation12 + $0x70] sm:$0xff]
    %v1269 = vld [vmem:[#allocation12 + $0x78] sm:$0xff]
    %v1270 = vld [vmem:[%s37] sm:$0x1]
    %v1272 = vlaneseq
    %v1273 = vshrl.u32 %v1272, 7
    %v1274 = vsub.s32 0, %v1273
    %v1275 = vrot.slane %v1270, %v1274
    %1277 = vmatprep.subr.mxu0 0.0
    %1278 = vmatpush1.msra.mxu0 %v1254
    %1279 = vmatprep.subr.mxu0 0.0
    %1280 = vmatpush1.msra.mxu0 %v1255
    %1281 = vmatprep.subr.mxu0 0.0
    %1282 = vmatpush1.msra.mxu0 %v1256
    %1283 = vmatprep.subr.mxu0 0.0
    %1284 = vmatpush1.msra.mxu0 %v1257
    %1285 = vmatprep.subr.mxu0 0.0
    %1286 = vmatpush1.msra.mxu0 %v1258
    %1287 = vmatprep.subr.mxu0 0.0
    %1288 = vmatpush1.msra.mxu0 %v1259
    %1289 = vmatprep.subr.mxu0 0.0
    %1290 = vmatpush1.msra.mxu0 %v1260
    %1291 = vmatprep.subr.mxu0 0.0
    %1292 = vmatpush1.msra.mxu0 %v1261
    %1293 = vmatprep.subr.mxu0 0.0
    %1294 = vmatpush1.msra.mxu0 %v1262
    %1295 = vmatprep.subr.mxu0 0.0
    %1296 = vmatpush1.msra.mxu0 %v1263
    %1297 = vmatprep.subr.mxu0 0.0
    %1298 = vmatpush1.msra.mxu0 %v1264
    %1299 = vmatprep.subr.mxu0 0.0
    %1300 = vmatpush1.msra.mxu0 %v1265
    %1301 = vmatprep.subr.mxu0 0.0
    %1302 = vmatpush1.msra.mxu0 %v1266
    %1303 = vmatprep.subr.mxu0 0.0
    %1304 = vmatpush1.msra.mxu0 %v1267
    %1305 = vmatprep.subr.mxu0 0.0
    %1306 = vmatpush1.msra.mxu0 %v1268
    %1307 = vmatprep.subr.mxu0 0.0
    %1308 = vmatpush1.msra.mxu0 %v1269
    %1309 = vmatprep.subr.mxu0 0.0
    %1310 = vmatpush1.msra.mxu0 0.0
    %1311 = vmatprep.subr.mxu0 0.0
    %1312 = vmatpush1.msra.mxu0 0.0
    %1313 = vmatprep.subr.mxu0 0.0
    %1314 = vmatpush1.msra.mxu0 0.0
    %1315 = vmatprep.subr.mxu0 0.0
    %1316 = vmatpush1.msra.mxu0 0.0
    %1317 = vmatprep.subr.mxu0 0.0
    %1318 = vmatpush1.msra.mxu0 0.0
    %1319 = vmatprep.subr.mxu0 0.0
    %1320 = vmatpush1.msra.mxu0 0.0
    %1321 = vmatprep.subr.mxu0 0.0
    %1322 = vmatpush1.msra.mxu0 0.0
    %1323 = vmatprep.subr.mxu0 0.0
    %1324 = vmatpush1.msra.mxu0 0.0
    %1325 = vmatprep.subr.mxu0 0.0
    %1326 = vmatpush1.msra.mxu0 0.0
    %1327 = vmatprep.subr.mxu0 0.0
    %1328 = vmatpush1.msra.mxu0 0.0
    %1329 = vmatprep.subr.mxu0 0.0
    %1330 = vmatpush1.msra.mxu0 0.0
    %1331 = vmatprep.subr.mxu0 0.0
    %1332 = vmatpush1.msra.mxu0 0.0
    %1333 = vmatprep.subr.mxu0 0.0
    %1334 = vmatpush1.msra.mxu0 0.0
    %1335 = vmatprep.subr.mxu0 0.0
    %1336 = vmatpush1.msra.mxu0 0.0
    %1337 = vmatprep.subr.mxu0 0.0
    %1338 = vmatpush1.msra.mxu0 0.0
    %1339 = vmatprep.subr.mxu0 0.0
    %1340 = vmatpush1.msra.mxu0 0.0
    %1341 = vmatprep.mubr.f32.mxu0 0.0
    %1342 = vmatmul.mubr.f32.gmra.mrb[0].mxu0 %v1253
    %v1343 = vpop.f32.mrb[0].mxu0
    %v1344 = vadd.f32 %v1275, %v1343
    %v1345 = vpop.f32.mrb[0].mxu0
    %1346 = vdwg.mxu0
    %v1347 = vmul.f32 %v1344, 0.5
    %v1348 = vmul.f32 %v1344, 0.044715
    %v1349 = vmul.f32 %v1348, %v1344
    %v1350 = vmul.f32 %v1349, %v1344
    %v1351 = vadd.f32 %v1344, %v1350
    %v1352 = vmul.f32 %v1351, 0.7978846
    %v1353 = vtanh.pop %v1352
    %v1354 = vadd.f32 %v1353, 1.0
    %v1355 = vmul.f32 %v1347, %v1354
    %v1356 = vld [vmem:[#allocation13] sm:$0xff]
    %v1357 = vld [vmem:[#allocation13 + $0x8] sm:$0xff]
    %v1358 = vld [vmem:[#allocation13 + $0x10] sm:$0xff]
    %v1359 = vld [vmem:[#allocation13 + $0x18] sm:$0xff]
    %v1360 = vld [vmem:[#allocation13 + $0x20] sm:$0xff]
    %v1361 = vld [vmem:[#allocation13 + $0x28] sm:$0xff]
    %v1362 = vld [vmem:[#allocation13 + $0x30] sm:$0xff]
    %v1363 = vld [vmem:[#allocation13 + $0x38] sm:$0xff]
    %v1364 = vld [vmem:[#allocation13 + $0x40] sm:$0xff]
    %v1365 = vld [vmem:[#allocation13 + $0x48] sm:$0xff]
    %v1366 = vld [vmem:[#allocation13 + $0x50] sm:$0xff]
    %v1367 = vld [vmem:[#allocation13 + $0x58] sm:$0xff]
    %v1368 = vld [vmem:[#allocation13 + $0x60] sm:$0xff]
    %v1369 = vld [vmem:[#allocation13 + $0x68] sm:$0xff]
    %v1370 = vld [vmem:[#allocation13 + $0x70] sm:$0xff]
    %v1371 = vld [vmem:[#allocation13 + $0x78] sm:$0xff]
    %v1372 = vld [vmem:[%s41] sm:$0x1]
    %v1374 = vlaneseq
    %v1375 = vshrl.u32 %v1374, 7
    %v1376 = vsub.s32 0, %v1375
    %v1377 = vrot.slane %v1372, %v1376
    %1379 = vmatprep.subr.mxu0 0.0
    %1380 = vmatpush1.msra.mxu0 %v1356
    %1381 = vmatprep.subr.mxu0 0.0
    %1382 = vmatpush1.msra.mxu0 %v1357
    %1383 = vmatprep.subr.mxu0 0.0
    %1384 = vmatpush1.msra.mxu0 %v1358
    %1385 = vmatprep.subr.mxu0 0.0
    %1386 = vmatpush1.msra.mxu0 %v1359
    %1387 = vmatprep.subr.mxu0 0.0
    %1388 = vmatpush1.msra.mxu0 %v1360
    %1389 = vmatprep.subr.mxu0 0.0
    %1390 = vmatpush1.msra.mxu0 %v1361
    %1391 = vmatprep.subr.mxu0 0.0
    %1392 = vmatpush1.msra.mxu0 %v1362
    %1393 = vmatprep.subr.mxu0 0.0
    %1394 = vmatpush1.msra.mxu0 %v1363
    %1395 = vmatprep.subr.mxu0 0.0
    %1396 = vmatpush1.msra.mxu0 %v1364
    %1397 = vmatprep.subr.mxu0 0.0
    %1398 = vmatpush1.msra.mxu0 %v1365
    %1399 = vmatprep.subr.mxu0 0.0
    %1400 = vmatpush1.msra.mxu0 %v1366
    %1401 = vmatprep.subr.mxu0 0.0
    %1402 = vmatpush1.msra.mxu0 %v1367
    %1403 = vmatprep.subr.mxu0 0.0
    %1404 = vmatpush1.msra.mxu0 %v1368
    %1405 = vmatprep.subr.mxu0 0.0
    %1406 = vmatpush1.msra.mxu0 %v1369
    %1407 = vmatprep.subr.mxu0 0.0
    %1408 = vmatpush1.msra.mxu0 %v1370
    %1409 = vmatprep.subr.mxu0 0.0
    %1410 = vmatpush1.msra.mxu0 %v1371
    %1411 = vmatprep.subr.mxu0 0.0
    %1412 = vmatpush1.msra.mxu0 0.0
    %1413 = vmatprep.subr.mxu0 0.0
    %1414 = vmatpush1.msra.mxu0 0.0
    %1415 = vmatprep.subr.mxu0 0.0
    %1416 = vmatpush1.msra.mxu0 0.0
    %1417 = vmatprep.subr.mxu0 0.0
    %1418 = vmatpush1.msra.mxu0 0.0
    %1419 = vmatprep.subr.mxu0 0.0
    %1420 = vmatpush1.msra.mxu0 0.0
    %1421 = vmatprep.subr.mxu0 0.0
    %1422 = vmatpush1.msra.mxu0 0.0
    %1423 = vmatprep.subr.mxu0 0.0
    %1424 = vmatpush1.msra.mxu0 0.0
    %1425 = vmatprep.subr.mxu0 0.0
    %1426 = vmatpush1.msra.mxu0 0.0
    %1427 = vmatprep.subr.mxu0 0.0
    %1428 = vmatpush1.msra.mxu0 0.0
    %1429 = vmatprep.subr.mxu0 0.0
    %1430 = vmatpush1.msra.mxu0 0.0
    %1431 = vmatprep.subr.mxu0 0.0
    %1432 = vmatpush1.msra.mxu0 0.0
    %1433 = vmatprep.subr.mxu0 0.0
    %1434 = vmatpush1.msra.mxu0 0.0
    %1435 = vmatprep.subr.mxu0 0.0
    %1436 = vmatpush1.msra.mxu0 0.0
    %1437 = vmatprep.subr.mxu0 0.0
    %1438 = vmatpush1.msra.mxu0 0.0
    %1439 = vmatprep.subr.mxu0 0.0
    %1440 = vmatpush1.msra.mxu0 0.0
    %1441 = vmatprep.subr.mxu0 0.0
    %1442 = vmatpush1.msra.mxu0 0.0
    %1443 = vmatprep.mubr.f32.mxu0 0.0
    %1444 = vmatmul.mubr.f32.gmra.mrb[0].mxu0 %v1355
    %v1445 = vpop.f32.mrb[0].mxu0
    %v1446 = vadd.f32 %v1377, %v1445
    %v1447 = vpop.f32.mrb[0].mxu0
    %1448 = vdwg.mxu0
    %v1449 = vld [vmem:[#allocation15] sm:$0xff]
    %v1450 = vld [vmem:[#allocation15 + $0x8] sm:$0xff]
    %v1451 = vld [vmem:[#allocation15 + $0x10] sm:$0xff]
    %v1452 = vld [vmem:[#allocation15 + $0x18] sm:$0xff]
    %v1453 = vld [vmem:[#allocation15 + $0x20] sm:$0xff]
    %v1454 = vld [vmem:[#allocation15 + $0x28] sm:$0xff]
    %v1455 = vld [vmem:[#allocation15 + $0x30] sm:$0xff]
    %v1456 = vld [vmem:[#allocation15 + $0x38] sm:$0xff]
    %v1457 = vld [vmem:[#allocation15 + $0x40] sm:$0xff]
    %v1458 = vld [vmem:[#allocation15 + $0x48] sm:$0xff]
    %v1459 = vld [vmem:[#allocation15 + $0x50] sm:$0xff]
    %v1460 = vld [vmem:[#allocation15 + $0x58] sm:$0xff]
    %v1461 = vld [vmem:[#allocation15 + $0x60] sm:$0xff]
    %v1462 = vld [vmem:[#allocation15 + $0x68] sm:$0xff]
    %v1463 = vld [vmem:[#allocation15 + $0x70] sm:$0xff]
    %v1464 = vld [vmem:[#allocation15 + $0x78] sm:$0xff]
    %v1465 = vld [vmem:[%s45] sm:$0x1]
    %v1467 = vlaneseq
    %v1468 = vshrl.u32 %v1467, 7
    %v1469 = vsub.s32 0, %v1468
    %v1470 = vrot.slane %v1465, %v1469
    %1472 = vmatprep.subr.mxu0 0.0
    %1473 = vmatpush1.msra.mxu0 %v1449
    %1474 = vmatprep.subr.mxu0 0.0
    %1475 = vmatpush1.msra.mxu0 %v1450
    %1476 = vmatprep.subr.mxu0 0.0
    %1477 = vmatpush1.msra.mxu0 %v1451
    %1478 = vmatprep.subr.mxu0 0.0
    %1479 = vmatpush1.msra.mxu0 %v1452
    %1480 = vmatprep.subr.mxu0 0.0
    %1481 = vmatpush1.msra.mxu0 %v1453
    %1482 = vmatprep.subr.mxu0 0.0
    %1483 = vmatpush1.msra.mxu0 %v1454
    %1484 = vmatprep.subr.mxu0 0.0
    %1485 = vmatpush1.msra.mxu0 %v1455
    %1486 = vmatprep.subr.mxu0 0.0
    %1487 = vmatpush1.msra.mxu0 %v1456
    %1488 = vmatprep.subr.mxu0 0.0
    %1489 = vmatpush1.msra.mxu0 %v1457
    %1490 = vmatprep.subr.mxu0 0.0
    %1491 = vmatpush1.msra.mxu0 %v1458
    %1492 = vmatprep.subr.mxu0 0.0
    %1493 = vmatpush1.msra.mxu0 %v1459
    %1494 = vmatprep.subr.mxu0 0.0
    %1495 = vmatpush1.msra.mxu0 %v1460
    %1496 = vmatprep.subr.mxu0 0.0
    %1497 = vmatpush1.msra.mxu0 %v1461
    %1498 = vmatprep.subr.mxu0 0.0
    %1499 = vmatpush1.msra.mxu0 %v1462
    %1500 = vmatprep.subr.mxu0 0.0
    %1501 = vmatpush1.msra.mxu0 %v1463
    %1502 = vmatprep.subr.mxu0 0.0
    %1503 = vmatpush1.msra.mxu0 %v1464
    %1504 = vmatprep.subr.mxu0 0.0
    %1505 = vmatpush1.msra.mxu0 0.0
    %1506 = vmatprep.subr.mxu0 0.0
    %1507 = vmatpush1.msra.mxu0 0.0
    %1508 = vmatprep.subr.mxu0 0.0
    %1509 = vmatpush1.msra.mxu0 0.0
    %1510 = vmatprep.subr.mxu0 0.0
    %1511 = vmatpush1.msra.mxu0 0.0
    %1512 = vmatprep.subr.mxu0 0.0
    %1513 = vmatpush1.msra.mxu0 0.0
    %1514 = vmatprep.subr.mxu0 0.0
    %1515 = vmatpush1.msra.mxu0 0.0
    %1516 = vmatprep.subr.mxu0 0.0
    %1517 = vmatpush1.msra.mxu0 0.0
    %1518 = vmatprep.subr.mxu0 0.0
    %1519 = vmatpush1.msra.mxu0 0.0
    %1520 = vmatprep.subr.mxu0 0.0
    %1521 = vmatpush1.msra.mxu0 0.0
    %1522 = vmatprep.subr.mxu0 0.0
    %1523 = vmatpush1.msra.mxu0 0.0
    %1524 = vmatprep.subr.mxu0 0.0
    %1525 = vmatpush1.msra.mxu0 0.0
    %1526 = vmatprep.subr.mxu0 0.0
    %1527 = vmatpush1.msra.mxu0 0.0
    %1528 = vmatprep.subr.mxu0 0.0
    %1529 = vmatpush1.msra.mxu0 0.0
    %1530 = vmatprep.subr.mxu0 0.0
    %1531 = vmatpush1.msra.mxu0 0.0
    %1532 = vmatprep.subr.mxu0 0.0
    %1533 = vmatpush1.msra.mxu0 0.0
    %1534 = vmatprep.subr.mxu0 0.0
    %1535 = vmatpush1.msra.mxu0 0.0
    %1536 = vmatprep.mubr.f32.mxu0 0.0
    %1537 = vmatmul.mubr.f32.gmra.mrb[0].mxu0 %v1355
    %v1538 = vpop.f32.mrb[0].mxu0
    %v1539 = vadd.f32 %v1470, %v1538
    %v1540 = vpop.f32.mrb[0].mxu0
    %1541 = vdwg.mxu0
    %v1542 = vsub.f32 0.0, %v1539
    %v1543 = vmul.f32 %v1542, 1.442695
    %v1544 = vpow.pop %v1543
    %v1545 = vadd.f32 %v1544, 1.0
    %v1546 = vrcp.pop %v1545
    %v1547 = vmul.f32 %v1546, 0.999
    %v1548 = vadd.f32 %v1547, 0.001
    %1549 = vst [vmem:[%s67] sm:$0xff] %v1446
    %1550 = vst [vmem:[%s71] sm:$0xff] %v1548
    %v1551 = vld [vmem:[%s9] sm:$0xff]
    %v1552 = vmul.f32 %v1548, %v1551
    %v1553 = vadd.f32 %v1446, %v1552
    %1554 = vst [vmem:[%s87] sm:$0xff] %v1553
    // Predicated region
    $region162: #{_lambda_.1} parent=1 // pred_check
      _
    $region163: #{_lambda_.1} parent=1 // pred_check_branch
      %1556 = sbr.rel (0) target = $region165
    $region164: #{_lambda_.1} parent=1 // pred_region
      _
    $region165: #{_lambda_.1} parent=1 // pred_fallthru
      _
    // Predicated region
    $region166: #{_lambda_.1} parent=1 // pred_check
      _
    $region167: #{_lambda_.1} parent=1 // pred_check_branch
      %1558 = sbr.rel (0) target = $region169
    $region168: #{_lambda_.1} parent=1 // pred_region
      _
    $region169: #{_lambda_.1} parent=1 // pred_fallthru
      _
    // Predicated region
    $region170: #{_lambda_.1} parent=1 // pred_check
      _
    $region171: #{_lambda_.1} parent=1 // pred_check_branch
      %1560 = sbr.rel (0) target = $region173
    $region172: #{_lambda_.1} parent=1 // pred_region
      _
    $region173: #{_lambda_.1} parent=1 // pred_fallthru
      _
    // Predicated region
    $region174: #{_lambda_.1} parent=1 // pred_check
      _
    $region175: #{_lambda_.1} parent=1 // pred_check_branch
      %1562 = sbr.rel (0) target = $region177
    $region176: #{_lambda_.1} parent=1 // pred_region
      _
    $region177: #{_lambda_.1} parent=1 // pred_fallthru
      _
    // Predicated region
    $region178: #{_lambda_.1} parent=1 // pred_check
      _
    $region179: #{_lambda_.1} parent=1 // pred_check_branch
      %1564 = sbr.rel (0) target = $region181
    $region180: #{_lambda_.1} parent=1 // pred_region
      _
    $region181: #{_lambda_.1} parent=1 // pred_fallthru
      _
    // Predicated region
    $region182: #{_lambda_.1} parent=1 // pred_check
      _
    $region183: #{_lambda_.1} parent=1 // pred_check_branch
      %1566 = sbr.rel (0) target = $region185
    $region184: #{_lambda_.1} parent=1 // pred_region
      _
    $region185: #{_lambda_.1} parent=1 // pred_fallthru
      _
    // Predicated region
    $region186: #{_lambda_.1} parent=1 // pred_check
      _
    $region187: #{_lambda_.1} parent=1 // pred_check_branch
      %1568 = sbr.rel (0) target = $region189
    $region188: #{_lambda_.1} parent=1 // pred_region
      _
    $region189: #{_lambda_.1} parent=1 // pred_fallthru
      _
    // Predicated region
    $region190: #{_lambda_.1} parent=1 // pred_check
      _
    $region191: #{_lambda_.1} parent=1 // pred_check_branch
      %1570 = sbr.rel (0) target = $region193
    $region192: #{_lambda_.1} parent=1 // pred_region
      _
    $region193: #{_lambda_.1} parent=1 // pred_fallthru
      _
    // Predicated region
    $region194: #{_lambda_.1} parent=1 // pred_check
      _
    $region195: #{_lambda_.1} parent=1 // pred_check_branch
      %1572 = sbr.rel (0) target = $region197
    $region196: #{_lambda_.1} parent=1 // pred_region
      _
    $region197: #{_lambda_.1} parent=1 // pred_fallthru
      _
    // Predicated region
    $region198: #{_lambda_.1} parent=1 // pred_check
      _
    $region199: #{_lambda_.1} parent=1 // pred_check_branch
      %1574 = sbr.rel (0) target = $region201
    $region200: #{_lambda_.1} parent=1 // pred_region
      _
    $region201: #{_lambda_.1} parent=1 // pred_fallthru
      _
    // Predicated region
    $region202: #{_lambda_.1} parent=1 // pred_check
      _
    $region203: #{_lambda_.1} parent=1 // pred_check_branch
      %1576 = sbr.rel (0) target = $region205
    $region204: #{_lambda_.1} parent=1 // pred_region
      _
    $region205: #{_lambda_.1} parent=1 // pred_fallthru
      _
    // Predicated region
    $region206: #{_lambda_.1} parent=1 // pred_check
      _
    $region207: #{_lambda_.1} parent=1 // pred_check_branch
      %1578 = sbr.rel (0) target = $region209
    $region208: #{_lambda_.1} parent=1 // pred_region
      _
    $region209: #{_lambda_.1} parent=1 // pred_fallthru
      _
    // Predicated region
    $region210: #{_lambda_.1} parent=1 // pred_check
      _
    $region211: #{_lambda_.1} parent=1 // pred_check_branch
      %1580 = sbr.rel (0) target = $region213
    $region212: #{_lambda_.1} parent=1 // pred_region
      _
    $region213: #{_lambda_.1} parent=1 // pred_fallthru
      _
    // Predicated region
    $region214: #{_lambda_.1} parent=1 // pred_check
      _
    $region215: #{_lambda_.1} parent=1 // pred_check_branch
      %1582 = sbr.rel (0) target = $region217
    $region216: #{_lambda_.1} parent=1 // pred_region
      _
    $region217: #{_lambda_.1} parent=1 // pred_fallthru
      _
    // Predicated region
    $region218: #{_lambda_.1} parent=1 // pred_check
      _
    $region219: #{_lambda_.1} parent=1 // pred_check_branch
      %1584 = sbr.rel (0) target = $region221
    $region220: #{_lambda_.1} parent=1 // pred_region
      _
    $region221: #{_lambda_.1} parent=1 // pred_fallthru
      _
    // Predicated region
    $region222: #{_lambda_.1} parent=1 // pred_check
      _
    $region223: #{_lambda_.1} parent=1 // pred_check_branch
      %1586 = sbr.rel (0) target = $region225
    $region224: #{_lambda_.1} parent=1 // pred_region
      _
    $region225: #{_lambda_.1} parent=1 // pred_fallthru
      _
    // Predicated region
    $region226: #{_lambda_.1} parent=1 // pred_check
      _
    $region227: #{_lambda_.1} parent=1 // pred_check_branch
      %1588 = sbr.rel (0) target = $region229
    $region228: #{_lambda_.1} parent=1 // pred_region
      _
    $region229: #{_lambda_.1} parent=1 // pred_fallthru
      _
    // Predicated region
    $region230: #{_lambda_.1} parent=1 // pred_check
      _
    $region231: #{_lambda_.1} parent=1 // pred_check_branch
      %1590 = sbr.rel (0) target = $region233
    $region232: #{_lambda_.1} parent=1 // pred_region
      _
    $region233: #{_lambda_.1} parent=1 // pred_fallthru
      _
    // Predicated region
    $region234: #{_lambda_.1} parent=1 // pred_check
      _
    $region235: #{_lambda_.1} parent=1 // pred_check_branch
      %1592 = sbr.rel (0) target = $region237
    $region236: #{_lambda_.1} parent=1 // pred_region
      _
    $region237: #{_lambda_.1} parent=1 // pred_fallthru
      _
    // Predicated region
    $region238: #{_lambda_.1} parent=1 // pred_check
      _
    $region239: #{_lambda_.1} parent=1 // pred_check_branch
      %1594 = sbr.rel (0) target = $region241
    $region240: #{_lambda_.1} parent=1 // pred_region
      _
    $region241: #{_lambda_.1} parent=1 // pred_fallthru
      _
    // Predicated region
    $region242: #{_lambda_.1} parent=1 // pred_check
      _
    $region243: #{_lambda_.1} parent=1 // pred_check_branch
      %1596 = sbr.rel (0) target = $region245
    $region244: #{_lambda_.1} parent=1 // pred_region
      _
    $region245: #{_lambda_.1} parent=1 // pred_fallthru
      _
    // Predicated region
    $region246: #{_lambda_.1} parent=1 // pred_check
      _
    $region247: #{_lambda_.1} parent=1 // pred_check_branch
      %1598 = sbr.rel (0) target = $region249
    $region248: #{_lambda_.1} parent=1 // pred_region
      _
    $region249: #{_lambda_.1} parent=1 // pred_fallthru
      _
    // Predicated region
    $region250: #{_lambda_.1} parent=1 // pred_check
      _
    $region251: #{_lambda_.1} parent=1 // pred_check_branch
      %1600 = sbr.rel (0) target = $region253
    $region252: #{_lambda_.1} parent=1 // pred_region
      _
    $region253: #{_lambda_.1} parent=1 // pred_fallthru
      _
    // Predicated region
    $region254: #{_lambda_.1} parent=1 // pred_check
      _
    $region255: #{_lambda_.1} parent=1 // pred_check_branch
      %1602 = sbr.rel (0) target = $region257
    $region256: #{_lambda_.1} parent=1 // pred_region
      _
    $region257: #{_lambda_.1} parent=1 // pred_fallthru
      _
    // Predicated region
    $region258: #{_lambda_.1} parent=1 // pred_check
      _
    $region259: #{_lambda_.1} parent=1 // pred_check_branch
      %1604 = sbr.rel (0) target = $region261
    $region260: #{_lambda_.1} parent=1 // pred_region
      _
    $region261: #{_lambda_.1} parent=1 // pred_fallthru
      _
    // Predicated region
    $region262: #{_lambda_.1} parent=1 // pred_check
      _
    $region263: #{_lambda_.1} parent=1 // pred_check_branch
      %1606 = sbr.rel (0) target = $region265
    $region264: #{_lambda_.1} parent=1 // pred_region
      _
    $region265: #{_lambda_.1} parent=1 // pred_fallthru
      _
    // Predicated region
    $region266: #{_lambda_.1} parent=1 // pred_check
      _
    $region267: #{_lambda_.1} parent=1 // pred_check_branch
      %1608 = sbr.rel (0) target = $region269
    $region268: #{_lambda_.1} parent=1 // pred_region
      _
    $region269: #{_lambda_.1} parent=1 // pred_fallthru
      _
    // Predicated region
    $region270: #{_lambda_.1} parent=1 // pred_check
      _
    $region271: #{_lambda_.1} parent=1 // pred_check_branch
      %1610 = sbr.rel (0) target = $region273
    $region272: #{_lambda_.1} parent=1 // pred_region
      _
    $region273: #{_lambda_.1} parent=1 // pred_fallthru
      _
    // Predicated region
    $region274: #{_lambda_.1} parent=1 // pred_check
      _
    $region275: #{_lambda_.1} parent=1 // pred_check_branch
      %1612 = sbr.rel (0) target = $region277
    $region276: #{_lambda_.1} parent=1 // pred_region
      _
    $region277: #{_lambda_.1} parent=1 // pred_fallthru
      _
    // Predicated region
    $region278: #{_lambda_.1} parent=1 // pred_check
      _
    $region279: #{_lambda_.1} parent=1 // pred_check_branch
      %1614 = sbr.rel (0) target = $region281
    $region280: #{_lambda_.1} parent=1 // pred_region
      _
    $region281: #{_lambda_.1} parent=1 // pred_fallthru
      _
    %1615 = vsyncpa [#allocation3], 1
    %1616 = vsyncpa [#allocation5], 1
    %1617 = vsyncpa [#allocation8], 1
    %1618 = vsyncpa [#allocation11], 1
    %1619 = vsyncpa [#allocation14], 1
    %1620 = vsyncpa [#allocation17], 1

</llo_original>
